<compile_context>
chip_gen: v7x
topology: tpu7x:2x2x1
jax: 0.10.0
libtpu: 0.0.40
codegen_flags: <defaults>
</compile_context>

<pallas_src>
import functools

import jax
import jax.numpy as jnp
import numpy as np
from jax.experimental import pallas as pl
from jax.experimental.pallas import tpu as pltpu


# ----------------------------- Pallas kernel --------------------------------
def _inr_kernel(coords_ref, w1t_ref, w2t_ref, b2c_ref, w3t_ref, b3c_ref,
                out_ref, *, acc_dtype):
    """Fused INR tile: 3 matmuls + 2 sines on a channels-first (C, Pt) slab.

    The per-sample affine coordinate transform and layer-1 bias are pre-folded
    into w1t (hidden, 3) acting on [x; y; 1] coords, and the per-sample masked
    color scale/shift is pre-folded into (w3t, b3c), so the body is a pure MLP
    on lane-dense tiles — no per-pixel slicing/concat, no bias for layer 1.
    """
    x = coords_ref[0]                                                  # (3, Pt)
    h = jnp.sin(jnp.dot(w1t_ref[0], x, preferred_element_type=acc_dtype))
    h = jnp.sin(jnp.dot(w2t_ref[...], h, preferred_element_type=acc_dtype)
                + b2c_ref[...])
    out_ref[0] = (jnp.dot(w3t_ref[0], h, preferred_element_type=jnp.float32)
                  + b3c_ref[0]).astype(out_ref.dtype)
    # TODO(synk): on v5e, if the bundle dump shows vst slot_util > ~50% from
    # spilling the (hidden, Pt) intermediates, process Pt in ~512-lane sub-chunks
    # with an unrolled fori_loop so h stays in vregs (no-op on v6e/v7x).


# ----------------------------- wrapper (glue) --------------------------------
def _round_up(x, m):
    return ((x + m - 1) // m) * m


def _choose_ptile(P, max_tile=8192, min_tiles=4):
    """Lane tile: big enough to amortize per-grid-step overhead, small enough to
    keep >= `min_tiles` tiles per sample for megacore load balance."""
    full = _round_up(P, 128)
    balanced = _round_up(pl.cdiv(P, min_tiles), 128)
    return max(128, min(max_tile, full, balanced))


def preferred_compute_dtype():
    """bf16 activations only on chips with a bf16 VALU (v6e / v7x)."""
    try:
        kind = jax.devices()[0].device_kind.lower()
    except Exception:
        return jnp.float32
    if "v6" in kind or "v7" in kind:
        return jnp.bfloat16
    return jnp.float32


@functools.partial(jax.jit, static_argnames=("compute_dtype", "max_tile"))
def inr_forward(x, sample_idx, params, compute_dtype=jnp.float32, max_tile=8192):
    B, H, W, C = x.shape
    assert C == 2
    P = H * W
    hidden = params["w1"].shape[1]
    Pt = _choose_ptile(P, max_tile=max_tile)
    P_pad = _round_up(P, Pt)
    num_tiles = P_pad // Pt
    f32 = jnp.float32

    # --- per-sample affine (rotation + translation) and layer-1 bias folded
    #     into an effective (hidden, 3) weight acting on [x; y; 1] -------------
    shift = params["shift_vectors"][sample_idx].astype(f32)            # (B, 2)
    angle = params["rotation_angle"][sample_idx][:, 0].astype(f32)     # (B,)
    dy = shift[:, 0]
    dx = shift[:, 1]
    cos = jnp.cos(angle)
    sin = jnp.sin(angle)
    A = jnp.stack([jnp.stack([cos, -sin], axis=-1),
                   jnp.stack([sin,  cos], axis=-1)], axis=-2)          # (B, 2, 2)
    w1 = params["w1"].astype(f32)                                      # (2, hidden)
    b1 = params["b1"].astype(f32)                                      # (1, hidden)
    w1t_rot = jnp.einsum("kh,bkj->bhj", w1, A)                         # (B, hidden, 2)
    t_vec = jnp.stack([dx, dy], axis=-1)                               # (B, 2)
    b1_eff = (t_vec @ w1 + b1)[:, :, None]                             # (B, hidden, 1)
    w1t_eff = jnp.concatenate([w1t_rot, b1_eff], axis=-1)              # (B, hidden, 3)

    # --- shared hidden layer (channels-first) --------------------------------
    w2t = params["w2"].astype(f32).T                                   # (hidden, hidden)
    b2c = params["b2"].astype(f32)[0][:, None]                         # (hidden, 1)

    # --- per-sample masked color transform folded into layer 3 ---------------
    apply = (sample_idx != 0)[:, None]                                 # (B, 1)
    eff_scale = jnp.where(apply, params["color_scales"][sample_idx], 1.0).astype(f32)
    eff_shift = jnp.where(apply, params["color_shifts"][sample_idx], 0.0).astype(f32)
    w3 = params["w3"].astype(f32)                                      # (hidden, 3)
    b3 = params["b3"].astype(f32)                                      # (1, 3)
    w3t_eff = (w3[None] * eff_scale[:, None, :]).transpose(0, 2, 1)    # (B, 3, hidden)
    b3c_eff = (b3 * eff_scale + eff_shift)[:, :, None]                 # (B, 3, 1) f32

    # --- channels-first [x; y; 1] coords, padded to a multiple of Pt ---------
    # (layout pass mandated by the channels-last module interface; fuses with
    #  the ones-append / pad / cast under jit.)
    coords_cf = x.reshape(B, P, 2).astype(f32).transpose(0, 2, 1)      # (B, 2, P)
    coords_aug = jnp.concatenate(
        [coords_cf, jnp.ones((B, 1, P), f32)], axis=1)                 # (B, 3, P)
    if P_pad != P:
        coords_aug = jnp.pad(coords_aug, ((0, 0), (0, 0), (0, P_pad - P)))
    coords_aug = coords_aug.astype(compute_dtype)

    kernel = functools.partial(_inr_kernel, acc_dtype=jnp.dtype(compute_dtype))
    out_cf = pl.pallas_call(
        kernel,
        out_shape=jax.ShapeDtypeStruct((B, 3, P_pad), jnp.float32),
        grid=(B, num_tiles),
        in_specs=[
            pl.BlockSpec((1, 3, Pt), lambda b, t: (b, 0, t)),           # coords
            pl.BlockSpec((1, hidden, 3), lambda b, t: (b, 0, 0)),       # w1t_eff
            pl.BlockSpec((hidden, hidden), lambda b, t: (0, 0)),        # w2t
            pl.BlockSpec((hidden, 1), lambda b, t: (0, 0)),             # b2c
            pl.BlockSpec((1, 3, hidden), lambda b, t: (b, 0, 0)),       # w3t_eff
            pl.BlockSpec((1, 3, 1), lambda b, t: (b, 0, 0)),            # b3c_eff
        ],
        out_specs=pl.BlockSpec((1, 3, Pt), lambda b, t: (b, 0, t)),
        compiler_params=pltpu.CompilerParams(
            dimension_semantics=("parallel", "parallel")),
    )(coords_aug,
      w1t_eff.astype(compute_dtype),
      w2t.astype(compute_dtype),
      b2c.astype(compute_dtype),
      w3t_eff.astype(compute_dtype),
      b3c_eff)

    # Interface-mandated channels-last output; drop the pixel padding.
    out = out_cf[:, :, :P].transpose(0, 2, 1).reshape(B, H, W, 3)
    return out, (dx, dy)


# ----------------------------- pure-JAX reference ----------------------------
def inr_reference(x, sample_idx, params):
    B, H, W, _ = x.shape
    shift = params["shift_vectors"][sample_idx]
    angle = params["rotation_angle"][sample_idx][:, 0]
    dy = shift[:, 0]
    dx = shift[:, 1]
    cos = jnp.cos(angle)
    sin = jnp.sin(angle)
    c = x.reshape(B, -1, 2)
    c0 = c[..., 0]
    c1 = c[..., 1]
    n0 = cos[:, None] * c0 - sin[:, None] * c1 + dx[:, None]
    n1 = sin[:, None] * c0 + cos[:, None] * c1 + dy[:, None]
    xy = jnp.stack([n0, n1], axis=-1)
    h = jnp.sin(xy @ params["w1"] + params["b1"])
    h = jnp.sin(h @ params["w2"] + params["b2"])
    rgb = h @ params["w3"] + params["b3"]
    apply = (sample_idx != 0)[:, None]
    scale = jnp.where(apply, params["color_scales"][sample_idx], 1.0)
    shift_c = jnp.where(apply, params["color_shifts"][sample_idx], 0.0)
    out = rgb * scale[:, None, :] + shift_c[:, None, :]
    return out.reshape(B, H, W, 3), (dx, dy)


# ----------------------------- parameter init --------------------------------
def init_params(key, num_samples=4, hidden=32):
    ks = jax.random.split(key, 10)
    return {
        "w1": jax.random.normal(ks[0], (2, hidden), jnp.float32) / np.sqrt(2.0),
        "b1": jax.random.normal(ks[1], (1, hidden), jnp.float32) * 0.01,
        "w2": jax.random.normal(ks[2], (hidden, hidden), jnp.float32) / np.sqrt(hidden),
        "b2": jax.random.normal(ks[3], (1, hidden), jnp.float32) * 0.01,
        "w3": jax.random.normal(ks[4], (hidden, 3), jnp.float32) / np.sqrt(hidden),
        "b3": jax.random.normal(ks[5], (1, 3), jnp.float32) * 0.01,
        "shift_vectors": jax.random.normal(ks[6], (num_samples, 2), jnp.float32) * 0.1,
        "rotation_angle": jax.random.normal(ks[7], (num_samples, 1), jnp.float32) * 0.1,
        "color_shifts": jax.random.normal(ks[8], (num_samples, 3), jnp.float32) * 0.1,
        "color_scales": 1.0 + jax.random.normal(ks[9], (num_samples, 3), jnp.float32) * 0.1,
    }


if __name__ == "__main__":
    key = jax.random.PRNGKey(0)
    k_param, k_x = jax.random.split(key)

    B, H, W = 2, 16, 16
    params = init_params(k_param, num_samples=4, hidden=32)

    # coordinate-like input in [-1, 1], channels-last (B, H, W, 2)
    x = jax.random.uniform(k_x, (B, H, W, 2), jnp.float32, minval=-1.0, maxval=1.0)
    sample_idx = jnp.array([0, 1], dtype=jnp.int32)   # exercise both color branches

    ref_out, ref_shifts = inr_reference(x, sample_idx, params)

    # Strict numerical check with f32 activations (reference-precision path).
    out, shifts = inr_forward(x, sample_idx, params, compute_dtype=jnp.float32)
    out = jax.block_until_ready(out)
    np.testing.assert_allclose(np.asarray(out), np.asarray(ref_out), rtol=2e-3, atol=2e-3)
    np.testing.assert_allclose(np.asarray(shifts[0]), np.asarray(ref_shifts[0]), rtol=1e-6)
    np.testing.assert_allclose(np.asarray(shifts[1]), np.asarray(ref_shifts[1]), rtol=1e-6)

    # Fast path: bf16 hidden-layer activations on chips with a bf16 VALU
    # (v6e / v7x). Looser tolerance since pre-activations are bf16-rounded.
    cdt = preferred_compute_dtype()
    if cdt != jnp.float32:
        out_fast, _ = inr_forward(x, sample_idx, params, compute_dtype=cdt)
        out_fast = jax.block_until_ready(out_fast)
        np.testing.assert_allclose(np.asarray(out_fast), np.asarray(ref_out),
                                   rtol=5e-2, atol=1e-1)

    print("KERNEL_OK")
</pallas_src>

<mosaic_0001>
module attributes {stable_mosaic.version = 11 : i64} {
  func.func @_inr_kernel(%arg0: i32, %arg1: i32, %arg2: memref<1x3x128xf32, #tpu.memory_space<vmem>>, %arg3: memref<1x32x3xf32, #tpu.memory_space<vmem>>, %arg4: memref<32x32xf32, #tpu.memory_space<vmem>>, %arg5: memref<32x1xf32, #tpu.memory_space<vmem>>, %arg6: memref<1x3x32xf32, #tpu.memory_space<vmem>>, %arg7: memref<1x3x1xf32, #tpu.memory_space<vmem>>, %arg8: memref<1x3x128xf32, #tpu.memory_space<vmem>>) attributes {dimension_semantics = [#tpu.dimension_semantics<parallel>, #tpu.dimension_semantics<parallel>], iteration_bounds = array<i64: 2, 2>, scalar_prefetch = 0 : i64, scratch_operands = 0 : i64, tpu.core_type = #tpu.core_type<tc>, window_params = [{transform_indices = @transform_0, window_bounds = array<i64: 1, 3, 128>}, {transform_indices = @transform_1, window_bounds = array<i64: 1, 32, 3>}, {pipeline_mode = #tpu.pipeline_mode<synchronous>, transform_indices = @transform_2, window_bounds = array<i64: 32, 32>}, {pipeline_mode = #tpu.pipeline_mode<synchronous>, transform_indices = @transform_3, window_bounds = array<i64: 32, 1>}, {transform_indices = @transform_4, window_bounds = array<i64: 1, 3, 32>}, {transform_indices = @transform_5, window_bounds = array<i64: 1, 3, 1>}, {transform_indices = @transform_6, window_bounds = array<i64: 1, 3, 128>}]} {
    %c0 = arith.constant 0 : index
    %c0_0 = arith.constant 0 : index
    %c0_1 = arith.constant 0 : index
    %0 = vector.load %arg2[%c0, %c0_0, %c0_1] : memref<1x3x128xf32, #tpu.memory_space<vmem>>, vector<1x3x128xf32>
    %1 = vector.shape_cast %0 : vector<1x3x128xf32> to vector<3x128xf32>
    %c0_2 = arith.constant 0 : index
    %c0_3 = arith.constant 0 : index
    %c0_4 = arith.constant 0 : index
    %2 = vector.load %arg3[%c0_2, %c0_3, %c0_4] : memref<1x32x3xf32, #tpu.memory_space<vmem>>, vector<1x32x3xf32>
    %3 = vector.shape_cast %2 : vector<1x32x3xf32> to vector<32x3xf32>
    %cst = arith.constant dense<0.000000e+00> : vector<32x128xf32>
    %4 = tpu.matmul %3, %1, %cst {dimension_numbers = #tpu.dot_dimension_numbers<[1], [0], [0], [1], [0, 0, 1, 1], [], []>} : vector<32x3xf32>, vector<3x128xf32>, vector<32x128xf32> -> vector<32x128xf32>
    %5 = math.sin %4 : vector<32x128xf32>
    %c0_5 = arith.constant 0 : index
    %c0_6 = arith.constant 0 : index
    %6 = vector.load %arg4[%c0_5, %c0_6] : memref<32x32xf32, #tpu.memory_space<vmem>>, vector<32x32xf32>
    %cst_7 = arith.constant dense<0.000000e+00> : vector<32x128xf32>
    %7 = tpu.matmul %6, %5, %cst_7 {dimension_numbers = #tpu.dot_dimension_numbers<[1], [0], [0], [1], [0, 0, 1, 1], [], []>} : vector<32x32xf32>, vector<32x128xf32>, vector<32x128xf32> -> vector<32x128xf32>
    %c0_8 = arith.constant 0 : index
    %c0_9 = arith.constant 0 : index
    %8 = vector.load %arg5[%c0_8, %c0_9] : memref<32x1xf32, #tpu.memory_space<vmem>>, vector<32x1xf32>
    %9 = vector.broadcast %8 : vector<32x1xf32> to vector<32x128xf32>
    %10 = arith.addf %7, %9 : vector<32x128xf32>
    %11 = math.sin %10 : vector<32x128xf32>
    %c0_10 = arith.constant 0 : index
    %c0_11 = arith.constant 0 : index
    %c0_12 = arith.constant 0 : index
    %12 = vector.load %arg6[%c0_10, %c0_11, %c0_12] : memref<1x3x32xf32, #tpu.memory_space<vmem>>, vector<1x3x32xf32>
    %13 = vector.shape_cast %12 : vector<1x3x32xf32> to vector<3x32xf32>
    %cst_13 = arith.constant dense<0.000000e+00> : vector<3x128xf32>
    %14 = tpu.matmul %13, %11, %cst_13 {dimension_numbers = #tpu.dot_dimension_numbers<[1], [0], [0], [1], [0, 0, 1, 1], [], []>} : vector<3x32xf32>, vector<32x128xf32>, vector<3x128xf32> -> vector<3x128xf32>
    %c0_14 = arith.constant 0 : index
    %c0_15 = arith.constant 0 : index
    %c0_16 = arith.constant 0 : index
    %15 = vector.load %arg7[%c0_14, %c0_15, %c0_16] : memref<1x3x1xf32, #tpu.memory_space<vmem>>, vector<1x3x1xf32>
    %16 = vector.shape_cast %15 : vector<1x3x1xf32> to vector<3x1xf32>
    %17 = vector.broadcast %16 : vector<3x1xf32> to vector<3x128xf32>
    %18 = arith.addf %14, %17 : vector<3x128xf32>
    %c0_17 = arith.constant 0 : index
    %c0_18 = arith.constant 0 : index
    %c0_19 = arith.constant 0 : index
    %19 = vector.load %arg8[%c0_17, %c0_18, %c0_19] : memref<1x3x128xf32, #tpu.memory_space<vmem>>, vector<1x3x128xf32>
    %20 = vector.shape_cast %19 : vector<1x3x128xf32> to vector<3x128xf32>
    %21 = vector.shape_cast %18 : vector<3x128xf32> to vector<1x3x128xf32>
    tpu.vector_store %arg8[%c0_17, %c0_18, %c0_19], %21 {strides = array<i32>} : memref<1x3x128xf32, #tpu.memory_space<vmem>>, vector<1x3x128xf32>,
    return
  }
  func.func @transform_0(%arg0: i32, %arg1: i32) -> (i32, i32, i32) {
    %c0_i32 = arith.constant 0 : i32
    %c0_i32_0 = arith.constant 0 : i32
    return %arg0, %c0_i32, %arg1 : i32, i32, i32
  }
  func.func @transform_1(%arg0: i32, %arg1: i32) -> (i32, i32, i32) {
    %c0_i32 = arith.constant 0 : i32
    %c0_i32_0 = arith.constant 0 : i32
    %c0_i32_1 = arith.constant 0 : i32
    return %arg0, %c0_i32, %c0_i32_0 : i32, i32, i32
  }
  func.func @transform_2(%arg0: i32, %arg1: i32) -> (i32, i32) {
    %c0_i32 = arith.constant 0 : i32
    %c0_i32_0 = arith.constant 0 : i32
    %c0_i32_1 = arith.constant 0 : i32
    return %c0_i32, %c0_i32_0 : i32, i32
  }
  func.func @transform_3(%arg0: i32, %arg1: i32) -> (i32, i32) {
    %c0_i32 = arith.constant 0 : i32
    %c0_i32_0 = arith.constant 0 : i32
    %c0_i32_1 = arith.constant 0 : i32
    return %c0_i32, %c0_i32_0 : i32, i32
  }
  func.func @transform_4(%arg0: i32, %arg1: i32) -> (i32, i32, i32) {
    %c0_i32 = arith.constant 0 : i32
    %c0_i32_0 = arith.constant 0 : i32
    %c0_i32_1 = arith.constant 0 : i32
    return %arg0, %c0_i32, %c0_i32_0 : i32, i32, i32
  }
  func.func @transform_5(%arg0: i32, %arg1: i32) -> (i32, i32, i32) {
    %c0_i32 = arith.constant 0 : i32
    %c0_i32_0 = arith.constant 0 : i32
    %c0_i32_1 = arith.constant 0 : i32
    return %arg0, %c0_i32, %c0_i32_0 : i32, i32, i32
  }
  func.func @transform_6(%arg0: i32, %arg1: i32) -> (i32, i32, i32) {
    %c0_i32 = arith.constant 0 : i32
    %c0_i32_0 = arith.constant 0 : i32
    return %arg0, %c0_i32, %arg1 : i32, i32, i32
  }
}

</mosaic_0001>

<llo_original>
// kernel: inr_forward.1
$region0: #{inr_forward.1}
  #allocation0 [shape = 'u32[]', space=smem, size = 0x4, offset = 0x4, fixed_abs, tag = 'smem constant byte address 0x4 - core index']
  #allocation1 [shape = 'u32[144,128]{1,0:T(1,128)}', space=vmem, size = 0x12000, scoped, tag = 'internal scratch']
  %s0 = inlined_call_operand.vmem [shape: f32[2,3,256], index: 0, kind: input, shape index: {}]
  %s1 = inlined_call_operand.vmem [shape: f32[2,32,3], index: 1, kind: input, shape index: {}]
  %s2 = inlined_call_operand.vmem [shape: f32[32,32], index: 2, kind: input, shape index: {}]
  %s3 = inlined_call_operand.vmem [shape: f32[32,1], index: 3, kind: input, shape index: {}]
  %s4 = inlined_call_operand.vmem [shape: f32[2,3,32], index: 4, kind: input, shape index: {}]
  %s5 = inlined_call_operand.vmem [shape: f32[2,3,1], index: 5, kind: input, shape index: {}]
  %s6 = inlined_call_operand.vmem [shape: f32[2,3,256], index: 6, kind: output, shape index: {}]
  %s7 = sld [smem:[#allocation0]]
  $region57: #{inr_forward.1} parent=0
    _
  %s9 = ssub.s32 1, %s7
  %s10 = scalar_select 0, %s9, %s7
  loop: start=0, step=1, limit=6
  $region2: #{inr_forward.1} parent=0 // loop_pre_header
    _
  $region3: #{inr_forward.1} parent=0 // loop_header
    %s12 = sphi 0, %s16
    %p13 = scmp.ge.s32.totalorder %s12, 6
    %s19 = sphi 0, %s31
    %s20 = sphi 0, %s27
    %s21 = sphi 0, %s19
    %s22 = sphi 0, %s20
    %s23 = sphi 0, %s21
    %s24 = sphi 0, %s22
    %s36 = sphi 0, %s38
    %s39 = sphi 0, %s36
    %s40 = sphi 0, %s39
    %s56 = sphi 0, %s40
    %s62 = sphi 0, %s64
    %s65 = sphi 0, %s62
    %s66 = sphi 0, %s65
    %s82 = sphi 0, %s66
    %s86 = sphi 0, %s86
    %s88 = sphi 0, %s86
    %s89 = sphi 0, %s88
    %s103 = sphi 0, %s89
    %s107 = sphi 0, %s107
    %s109 = sphi 0, %s107
    %s110 = sphi 0, %s109
    %s124 = sphi 0, %s110
    %s130 = sphi 0, %s132
    %s133 = sphi 0, %s130
    %s134 = sphi 0, %s133
    %s150 = sphi 0, %s134
    %s156 = sphi 0, %s158
    %s159 = sphi 0, %s156
    %s160 = sphi 0, %s159
    %s176 = sphi 0, %s160
    %s184 = sphi 0, %s186
    %s187 = sphi 0, %s184
    %s188 = sphi 0, %s187
    %s204 = sphi 0, %s188
  $region4: #{inr_forward.1} parent=0 // loop_header_branch
    %15 = sbr.rel (%p13) target = $region8
  $region5: #{inr_forward.1} parent=0 // loop_body
    %s17 = ssub.s32 %s12, 1
    %s18 = ssub.s32 %s12, 2
    %s25 = sadd.s32 1, %s20
    %p26 = scmp.ge.s32.totalorder %s25, 2
    %s27 = scalar_select %p26, 0, %s25
    %s28 = sadd.s32 1, %s19
    %s29 = scalar_select %p26, %s28, %s19
    %p30 = scmp.ge.s32.totalorder %s29, 2
    %s31 = scalar_select %p30, 0, %s29
    %s32 = ssub.s32 %s19, %s31
    %s33 = ssub.s32 %s20, %s27
    %s34 = sor.u32 %s32, %s33
    %p35 = scmp.eq.s32.totalorder %s34, 0
    %s37 = sadd.s32 %s36, 1
    %s38 = scalar_select %p35, %s36, %s37
    %p41 = pneg %p35
    %p42 = scmp.eq.s32.totalorder %s12, 3
    %p43 = por %p41, %p42
    %p44 = scmp.ne.s32.totalorder %s36, %s39
    %p45 = scmp.eq.s32.totalorder %s12, 0
    %p46 = por %p44, %p45
    %p47 = scmp.ne.s32.totalorder %s36, %s39
    %p48 = scmp.eq.s32.totalorder %s17, 3
    %p49 = por %p47, %p48
    %p50 = scmp.ne.s32.totalorder %s39, %s40
    %p51 = scmp.eq.s32.totalorder %s17, 0
    %p52 = por %p50, %p51
    %p53 = scmp.ne.s32.totalorder %s39, %s40
    %p54 = scmp.eq.s32.totalorder %s18, 3
    %p55 = por %p53, %p54
    %p57 = scmp.ne.s32.totalorder %s40, %s56
    %p58 = scmp.eq.s32.totalorder %s18, 0
    %p59 = por %p57, %p58
    %s60 = ssub.s32 %s19, %s31
    %p61 = scmp.eq.s32.totalorder %s60, 0
    %s63 = sadd.s32 %s62, 1
    %s64 = scalar_select %p61, %s62, %s63
    %p67 = pneg %p61
    %p68 = scmp.eq.s32.totalorder %s12, 3
    %p69 = por %p67, %p68
    %p70 = scmp.ne.s32.totalorder %s62, %s65
    %p71 = scmp.eq.s32.totalorder %s12, 0
    %p72 = por %p70, %p71
    %p73 = scmp.ne.s32.totalorder %s62, %s65
    %p74 = scmp.eq.s32.totalorder %s17, 3
    %p75 = por %p73, %p74
    %p76 = scmp.ne.s32.totalorder %s65, %s66
    %p77 = scmp.eq.s32.totalorder %s17, 0
    %p78 = por %p76, %p77
    %p79 = scmp.ne.s32.totalorder %s65, %s66
    %p80 = scmp.eq.s32.totalorder %s18, 3
    %p81 = por %p79, %p80
    %p83 = scmp.ne.s32.totalorder %s66, %s82
    %p84 = scmp.eq.s32.totalorder %s18, 0
    %p85 = por %p83, %p84
    %s87 = sadd.s32 %s86, 1
    %p90 = scmp.eq.s32.totalorder %s12, 3
    %p91 = scmp.ne.s32.totalorder %s86, %s88
    %p92 = scmp.eq.s32.totalorder %s12, 0
    %p93 = por %p91, %p92
    %p94 = scmp.ne.s32.totalorder %s86, %s88
    %p95 = scmp.eq.s32.totalorder %s17, 3
    %p96 = por %p94, %p95
    %p97 = scmp.ne.s32.totalorder %s88, %s89
    %p98 = scmp.eq.s32.totalorder %s17, 0
    %p99 = por %p97, %p98
    %p100 = scmp.ne.s32.totalorder %s88, %s89
    %p101 = scmp.eq.s32.totalorder %s18, 3
    %p102 = por %p100, %p101
    %p104 = scmp.ne.s32.totalorder %s89, %s103
    %p105 = scmp.eq.s32.totalorder %s18, 0
    %p106 = por %p104, %p105
    %s108 = sadd.s32 %s107, 1
    %p111 = scmp.eq.s32.totalorder %s12, 3
    %p112 = scmp.ne.s32.totalorder %s107, %s109
    %p113 = scmp.eq.s32.totalorder %s12, 0
    %p114 = por %p112, %p113
    %p115 = scmp.ne.s32.totalorder %s107, %s109
    %p116 = scmp.eq.s32.totalorder %s17, 3
    %p117 = por %p115, %p116
    %p118 = scmp.ne.s32.totalorder %s109, %s110
    %p119 = scmp.eq.s32.totalorder %s17, 0
    %p120 = por %p118, %p119
    %p121 = scmp.ne.s32.totalorder %s109, %s110
    %p122 = scmp.eq.s32.totalorder %s18, 3
    %p123 = por %p121, %p122
    %p125 = scmp.ne.s32.totalorder %s110, %s124
    %p126 = scmp.eq.s32.totalorder %s18, 0
    %p127 = por %p125, %p126
    %s128 = ssub.s32 %s19, %s31
    %p129 = scmp.eq.s32.totalorder %s128, 0
    %s131 = sadd.s32 %s130, 1
    %s132 = scalar_select %p129, %s130, %s131
    %p135 = pneg %p129
    %p136 = scmp.eq.s32.totalorder %s12, 3
    %p137 = por %p135, %p136
    %p138 = scmp.ne.s32.totalorder %s130, %s133
    %p139 = scmp.eq.s32.totalorder %s12, 0
    %p140 = por %p138, %p139
    %p141 = scmp.ne.s32.totalorder %s130, %s133
    %p142 = scmp.eq.s32.totalorder %s17, 3
    %p143 = por %p141, %p142
    %p144 = scmp.ne.s32.totalorder %s133, %s134
    %p145 = scmp.eq.s32.totalorder %s17, 0
    %p146 = por %p144, %p145
    %p147 = scmp.ne.s32.totalorder %s133, %s134
    %p148 = scmp.eq.s32.totalorder %s18, 3
    %p149 = por %p147, %p148
    %p151 = scmp.ne.s32.totalorder %s134, %s150
    %p152 = scmp.eq.s32.totalorder %s18, 0
    %p153 = por %p151, %p152
    %s154 = ssub.s32 %s19, %s31
    %p155 = scmp.eq.s32.totalorder %s154, 0
    %s157 = sadd.s32 %s156, 1
    %s158 = scalar_select %p155, %s156, %s157
    %p161 = pneg %p155
    %p162 = scmp.eq.s32.totalorder %s12, 3
    %p163 = por %p161, %p162
    %p164 = scmp.ne.s32.totalorder %s156, %s159
    %p165 = scmp.eq.s32.totalorder %s12, 0
    %p166 = por %p164, %p165
    %p167 = scmp.ne.s32.totalorder %s156, %s159
    %p168 = scmp.eq.s32.totalorder %s17, 3
    %p169 = por %p167, %p168
    %p170 = scmp.ne.s32.totalorder %s159, %s160
    %p171 = scmp.eq.s32.totalorder %s17, 0
    %p172 = por %p170, %p171
    %p173 = scmp.ne.s32.totalorder %s159, %s160
    %p174 = scmp.eq.s32.totalorder %s18, 3
    %p175 = por %p173, %p174
    %p177 = scmp.ne.s32.totalorder %s160, %s176
    %p178 = scmp.eq.s32.totalorder %s18, 0
    %p179 = por %p177, %p178
    %s180 = ssub.s32 %s19, %s31
    %s181 = ssub.s32 %s20, %s27
    %s182 = sor.u32 %s180, %s181
    %p183 = scmp.eq.s32.totalorder %s182, 0
    %s185 = sadd.s32 %s184, 1
    %s186 = scalar_select %p183, %s184, %s185
    %p189 = pneg %p183
    %p190 = scmp.eq.s32.totalorder %s12, 3
    %p191 = por %p189, %p190
    %p192 = scmp.ne.s32.totalorder %s184, %s187
    %p193 = scmp.eq.s32.totalorder %s12, 0
    %p194 = por %p192, %p193
    %p195 = scmp.ne.s32.totalorder %s184, %s187
    %p196 = scmp.eq.s32.totalorder %s17, 3
    %p197 = por %p195, %p196
    %p198 = scmp.ne.s32.totalorder %s187, %s188
    %p199 = scmp.eq.s32.totalorder %s17, 0
    %p200 = por %p198, %p199
    %p201 = scmp.ne.s32.totalorder %s187, %s188
    %p202 = scmp.eq.s32.totalorder %s18, 3
    %p203 = por %p201, %p202
    %p205 = scmp.ne.s32.totalorder %s188, %s204
    %p206 = scmp.eq.s32.totalorder %s18, 0
    %p207 = por %p205, %p206
    %p208 = scmp.le.s32.totalorder 1, %s12
    %p209 = scmp.lt.s32.totalorder %s12, 5
    %p210 = pnand %p208, %p209
    %p211 = pneg %p210
    // Predicated region
    $region9: #{inr_forward.1} parent=5 // pred_check
      _
    $region10: #{inr_forward.1} parent=5 // pred_check_branch
      %213 = sbr.rel (%p210) target = $region12
    $region11: #{inr_forward.1} parent=5 // pred_region
      %s214 = ssub.s32 %s12, 1
      // Predicated region
      $region13: #{inr_forward.1} parent=11 // pred_check
        %p215 = pneg %p99
      $region14: #{inr_forward.1} parent=11 // pred_check_branch
        %217 = sbr.rel (%p215) target = $region16
      $region15: #{inr_forward.1} parent=11 // pred_region
        _
      $region16: #{inr_forward.1} parent=11 // pred_fallthru
        _
      // Predicated region
      $region17: #{inr_forward.1} parent=11 // pred_check
        %p218 = pneg %p120
      $region18: #{inr_forward.1} parent=11 // pred_check_branch
        %220 = sbr.rel (%p218) target = $region20
      $region19: #{inr_forward.1} parent=11 // pred_region
        _
      $region20: #{inr_forward.1} parent=11 // pred_fallthru
        _
    $region12: #{inr_forward.1} parent=5 // pred_fallthru
      _
    %p221 = scmp.lt.s32.totalorder %s12, 4
    // Predicated region
    $region21: #{inr_forward.1} parent=5 // pred_check
      %p222 = pneg %p221
    $region22: #{inr_forward.1} parent=5 // pred_check_branch
      %224 = sbr.rel (%p222) target = $region24
    $region23: #{inr_forward.1} parent=5 // pred_region
      // Predicated region
      $region25: #{inr_forward.1} parent=23 // pred_check
        %p225 = pneg %p46
      $region26: #{inr_forward.1} parent=23 // pred_check_branch
        %227 = sbr.rel (%p225) target = $region28
      $region27: #{inr_forward.1} parent=23 // pred_region
        %p228 = scmp.lt.s32.totalorder %s19, 1
        %s229 = scalar_select %p228, %s19, 1
        %p230 = scmp.lt.s32.totalorder %s20, 1
        %s231 = scalar_select %p230, %s20, 1
        %s232 = smul.addr %s229, 2
        %s233 = sadd.s32 %s231, %s232
        %s234 = smul.addr %s233, 4
        %s235 = scalar_lea.vmem %s0, %s234
      $region28: #{inr_forward.1} parent=23 // pred_fallthru
        _
      // Predicated region
      $region29: #{inr_forward.1} parent=23 // pred_check
        %p236 = pneg %p72
      $region30: #{inr_forward.1} parent=23 // pred_check_branch
        %238 = sbr.rel (%p236) target = $region32
      $region31: #{inr_forward.1} parent=23 // pred_region
        %p239 = scmp.lt.s32.totalorder %s19, 1
        %s240 = scalar_select %p239, %s19, 1
        %s241 = smul.addr %s240, 4
        %s242 = smul.addr %s241, 8
        %s243 = scalar_lea.vmem %s1, %s242
      $region32: #{inr_forward.1} parent=23 // pred_fallthru
        _
      // Predicated region
      $region33: #{inr_forward.1} parent=23 // pred_check
        %p244 = pneg %p140
      $region34: #{inr_forward.1} parent=23 // pred_check_branch
        %246 = sbr.rel (%p244) target = $region36
      $region35: #{inr_forward.1} parent=23 // pred_region
        %p247 = scmp.lt.s32.totalorder %s19, 1
        %s248 = scalar_select %p247, %s19, 1
        %s249 = smul.addr %s248, 4
        %s250 = scalar_lea.vmem %s4, %s249
      $region36: #{inr_forward.1} parent=23 // pred_fallthru
        _
      // Predicated region
      $region37: #{inr_forward.1} parent=23 // pred_check
        %p251 = pneg %p166
      $region38: #{inr_forward.1} parent=23 // pred_check_branch
        %253 = sbr.rel (%p251) target = $region40
      $region39: #{inr_forward.1} parent=23 // pred_region
        %p254 = scmp.lt.s32.totalorder %s19, 1
        %s255 = scalar_select %p254, %s19, 1
        %s256 = smul.addr %s255, 4
        %s257 = scalar_lea.vmem %s5, %s256
      $region40: #{inr_forward.1} parent=23 // pred_fallthru
        _
    $region24: #{inr_forward.1} parent=5 // pred_fallthru
      _
    %p258 = scmp.le.s32.totalorder 1, %s12
    %p259 = scmp.lt.s32.totalorder %s12, 5
    %p260 = pnand %p258, %p259
    %p261 = pneg %p260
    // Predicated region
    $region41: #{inr_forward.1} parent=5 // pred_check
      _
    $region42: #{inr_forward.1} parent=5 // pred_check_branch
      %263 = sbr.rel (%p260) target = $region44
    $region43: #{inr_forward.1} parent=5 // pred_region
      %s264 = ssub.s32 %s12, 1
      %p265 = scmp.lt.s32.totalorder %s21, 1
      %s266 = scalar_select %p265, %s21, 1
      %p267 = scmp.lt.s32.totalorder %s22, 1
      %s268 = scalar_select %p267, %s22, 1
      %s269 = smul.addr %s266, 2
      %s270 = sadd.s32 %s268, %s269
      %s271 = smul.addr %s270, 4
      %s272 = scalar_lea.vmem %s0, %s271
      %p273 = pneg %p52
      %p274 = pneg %p49
      %p275 = scmp.lt.s32.totalorder %s21, 1
      %s276 = scalar_select %p275, %s21, 1
      %s277 = smul.addr %s276, 4
      %s278 = smul.addr %s277, 8
      %s279 = scalar_lea.vmem %s1, %s278
      %p280 = pneg %p78
      %p281 = pneg %p75
      %p282 = pneg %p99
      %p283 = pneg %p96
      %p284 = pneg %p120
      %p285 = pneg %p117
      %p286 = scmp.lt.s32.totalorder %s21, 1
      %s287 = scalar_select %p286, %s21, 1
      %s288 = smul.addr %s287, 4
      %s289 = scalar_lea.vmem %s4, %s288
      %p290 = pneg %p146
      %p291 = pneg %p143
      %p292 = scmp.lt.s32.totalorder %s21, 1
      %s293 = scalar_select %p292, %s21, 1
      %s294 = smul.addr %s293, 4
      %s295 = scalar_lea.vmem %s5, %s294
      %p296 = pneg %p172
      %p297 = pneg %p169
      %p298 = pneg %p200
      %p299 = pneg %p197
      %p300 = scmp.lt.s32.totalorder %s21, 1
      %s301 = scalar_select %p300, %s21, 1
      %p302 = scmp.lt.s32.totalorder %s22, 1
      %s303 = scalar_select %p302, %s22, 1
      %s304 = smul.addr %s301, 2
      %s305 = sadd.s32 %s303, %s304
      %s306 = smul.addr %s305, 4
      %s307 = scalar_lea.vmem %s6, %s306
      %p308 = scmp.lt.s32.totalorder %s21, 1
      %s309 = scalar_select %p308, %s21, 1
      %p310 = scmp.lt.s32.totalorder %s22, 1
      %s311 = scalar_select %p310, %s22, 1
      %s312 = smul.addr %s309, 2
      %s313 = sadd.s32 %s311, %s312
      %s314 = smul.addr %s313, 4
      %s315 = scalar_lea.vmem %s0, %s314
      %p316 = scmp.lt.s32.totalorder %s21, 1
      %s317 = scalar_select %p316, %s21, 1
      %s318 = smul.addr %s317, 4
      %s319 = smul.addr %s318, 8
      %s320 = scalar_lea.vmem %s1, %s319
      %p321 = scmp.lt.s32.totalorder %s21, 1
      %s322 = scalar_select %p321, %s21, 1
      %s323 = smul.addr %s322, 4
      %s324 = scalar_lea.vmem %s4, %s323
      %p325 = scmp.lt.s32.totalorder %s21, 1
      %s326 = scalar_select %p325, %s21, 1
      %s327 = smul.addr %s326, 4
      %s328 = scalar_lea.vmem %s5, %s327
      %p329 = scmp.lt.s32.totalorder %s21, 1
      %s330 = scalar_select %p329, %s21, 1
      %p331 = scmp.lt.s32.totalorder %s22, 1
      %s332 = scalar_select %p331, %s22, 1
      %s333 = smul.addr %s330, 2
      %s334 = sadd.s32 %s332, %s333
      %s335 = smul.addr %s334, 4
      %s336 = scalar_lea.vmem %s6, %s335
      %v337 = vld [vmem:[%s315] sm:$0x7]
      %v338 = vld [vmem:[%s320] sm:$0xff]
      %v339 = vld [vmem:[%s320 + $0x8] sm:$0xff]
      %v340 = vld [vmem:[%s320 + $0x10] sm:$0xff]
      %v341 = vld [vmem:[%s320 + $0x18] sm:$0xff]
      %vm342 = vcmask 23552
      %v344 = vsel %vm342, %v338, 0
      %v347 = vsel %vm342, %v339, 0
      %v350 = vsel %vm342, %v340, 0
      %v353 = vsel %vm342, %v341, 0
      %vm355 = vcmask 1042432
      %v357 = vsel %vm355, %v337, 0
      %359 = vmatprep.subr.mxu0 0.0
      %360 = vmatpush1.msra.mxu0 %v357
      %361 = vmatprep.subr.mxu0 0.0
      %362 = vmatpush1.msra.mxu0 0.0
      %363 = vmatprep.subr.mxu0 0.0
      %364 = vmatpush1.msra.mxu0 0.0
      %365 = vmatprep.subr.mxu0 0.0
      %366 = vmatpush1.msra.mxu0 0.0
      %367 = vmatprep.subr.mxu0 0.0
      %368 = vmatpush1.msra.mxu0 0.0
      %369 = vmatprep.subr.mxu0 0.0
      %370 = vmatpush1.msra.mxu0 0.0
      %371 = vmatprep.subr.mxu0 0.0
      %372 = vmatpush1.msra.mxu0 0.0
      %373 = vmatprep.subr.mxu0 0.0
      %374 = vmatpush1.msra.mxu0 0.0
      %375 = vmatprep.subr.mxu0 0.0
      %376 = vmatpush1.msra.mxu0 0.0
      %377 = vmatprep.subr.mxu0 0.0
      %378 = vmatpush1.msra.mxu0 0.0
      %379 = vmatprep.subr.mxu0 0.0
      %380 = vmatpush1.msra.mxu0 0.0
      %381 = vmatprep.subr.mxu0 0.0
      %382 = vmatpush1.msra.mxu0 0.0
      %383 = vmatprep.subr.mxu0 0.0
      %384 = vmatpush1.msra.mxu0 0.0
      %385 = vmatprep.subr.mxu0 0.0
      %386 = vmatpush1.msra.mxu0 0.0
      %387 = vmatprep.subr.mxu0 0.0
      %388 = vmatpush1.msra.mxu0 0.0
      %389 = vmatprep.subr.mxu0 0.0
      %390 = vmatpush1.msra.mxu0 0.0
      %391 = vmatprep.subr.mxu0 0.0
      %392 = vmatpush1.msra.mxu0 0.0
      %393 = vmatprep.subr.mxu0 0.0
      %394 = vmatpush1.msra.mxu0 0.0
      %395 = vmatprep.subr.mxu0 0.0
      %396 = vmatpush1.msra.mxu0 0.0
      %397 = vmatprep.subr.mxu0 0.0
      %398 = vmatpush1.msra.mxu0 0.0
      %399 = vmatprep.subr.mxu0 0.0
      %400 = vmatpush1.msra.mxu0 0.0
      %401 = vmatprep.subr.mxu0 0.0
      %402 = vmatpush1.msra.mxu0 0.0
      %403 = vmatprep.subr.mxu0 0.0
      %404 = vmatpush1.msra.mxu0 0.0
      %405 = vmatprep.subr.mxu0 0.0
      %406 = vmatpush1.msra.mxu0 0.0
      %407 = vmatprep.subr.mxu0 0.0
      %408 = vmatpush1.msra.mxu0 0.0
      %409 = vmatprep.subr.mxu0 0.0
      %410 = vmatpush1.msra.mxu0 0.0
      %411 = vmatprep.subr.mxu0 0.0
      %412 = vmatpush1.msra.mxu0 0.0
      %413 = vmatprep.subr.mxu0 0.0
      %414 = vmatpush1.msra.mxu0 0.0
      %415 = vmatprep.subr.mxu0 0.0
      %416 = vmatpush1.msra.mxu0 0.0
      %417 = vmatprep.subr.mxu0 0.0
      %418 = vmatpush1.msra.mxu0 0.0
      %419 = vmatprep.subr.mxu0 0.0
      %420 = vmatpush1.msra.mxu0 0.0
      %421 = vmatprep.subr.mxu0 0.0
      %422 = vmatpush1.msra.mxu0 0.0
      %423 = vmatprep.mubr.f32.mxu0 0.0
      %424 = vmatmul.mubr.f32.gmra.mrb[0].mxu0 %v344
      %v425 = vpop.f32.mrb[0].mxu0
      %v426 = vadd.f32 0.0, %v425
      %v427 = vpop.f32.mrb[0].mxu0
      %428 = vmatprep.mubr.f32.mxu0 0.0
      %429 = vmatmul.mubr.f32.gmra.mrb[0].mxu0 %v347
      %v430 = vpop.f32.mrb[0].mxu0
      %v431 = vadd.f32 0.0, %v430
      %v432 = vpop.f32.mrb[0].mxu0
      %433 = vmatprep.mubr.f32.mxu0 0.0
      %434 = vmatmul.mubr.f32.gmra.mrb[0].mxu0 %v350
      %v435 = vpop.f32.mrb[0].mxu0
      %v436 = vadd.f32 0.0, %v435
      %v437 = vpop.f32.mrb[0].mxu0
      %438 = vmatprep.mubr.f32.mxu0 0.0
      %439 = vmatmul.mubr.f32.gmra.mrb[0].mxu0 %v353
      %v440 = vpop.f32.mrb[0].mxu0
      %v441 = vadd.f32 0.0, %v440
      %v442 = vpop.f32.mrb[0].mxu0
      %443 = vdwg.mxu0
      %v444 = vand.u32 2147483647, %v426
      %vm445 = vcmp.le.f32.partialorder %v444, 0.7853982
      %vm446 = vcmp.lt.s32.totalorder %v426, 0
      %v447 = vand.u32 %v426, 2139095040
      %v448 = vshrl.u32 %v447, 23
      %v449 = vsub.s32 %v448, 127
      %v450 = vand.u32 2147483647, %v426
      %v451 = vand.u32 %v450, 8388607
      %v452 = vor.u32 %v451, 8388608
      %v453 = vsub.s32 0, %v452
      %v454 = vadd.s32 %v449, 1
      %vm455 = vcmp.gt.s32.totalorder %v454, 0
      %v456 = vsel %vm455, %v454, 0
      %v457 = vshrl.u32 %v456, 5
      %v458 = vand.u32 %v456, 31
      %v459 = vsub.s32 32, %v458
      %v460 = vshrl.u32 683565275, %v459
      %v461 = vshll.u32 683565275, %v458
      %v462 = vshrl.u32 2475754826, %v459
      %v463 = vor.u32 %v461, %v462
      %v464 = vshll.u32 2475754826, %v458
      %v465 = vshrl.u32 2131351028, %v459
      %v466 = vor.u32 %v464, %v465
      %v467 = vshll.u32 2131351028, %v458
      %v468 = vshrl.u32 2102212464, %v459
      %v469 = vor.u32 %v467, %v468
      %v470 = vshll.u32 2102212464, %v458
      %v471 = vshrl.u32 920167782, %v459
      %v472 = vor.u32 %v470, %v471
      %v473 = vshll.u32 920167782, %v458
      %v474 = vshrl.u32 1326507024, %v459
      %v475 = vor.u32 %v473, %v474
      %vm476 = vcmp.lt.s32.totalorder %v457, 1
      %vm477 = vcmp.lt.s32.totalorder %v457, 2
      %vm478 = vcmp.lt.s32.totalorder %v457, 3
      %vm479 = vcmp.lt.s32.totalorder %v457, 4
      %v480 = vsel %vm476, %v460, %v463
      %v481 = vsel %vm479, %v469, 2102212464
      %v482 = vsel %vm478, %v466, %v481
      %v483 = vsel %vm477, %v480, %v482
      %v484 = vsel %vm476, %v463, %v466
      %v485 = vsel %vm479, %v472, 920167782
      %v486 = vsel %vm478, %v469, %v485
      %v487 = vsel %vm477, %v484, %v486
      %v488 = vsel %vm476, %v466, %v469
      %v489 = vsel %vm479, %v475, 1326507024
      %v490 = vsel %vm478, %v472, %v489
      %v491 = vsel %vm477, %v488, %v490
      %v492 = vshll.u32 %v452, 8
      %v493 = vmul.u32.u64.compose %v492, %v491
      %v494 = vextract.low.u32 %v493
      %v495 = vextract.high.u32 %v493
      %v496 = vmul.u32.u64.compose %v492, %v487
      %v497 = vextract.low.u32 %v496
      %v498 = vextract.high.u32 %v496
      %v499 = vmul.u32 %v492, %v483
      %v500 = vadd.s32 %v495, %v497
      %vm501 = vc.u32 %v495, %v497
      %v502 = vadd.s32 %v498, 1
      %v503 = vsel %vm501, %v502, %v498
      %v504 = vadd.s32 %v499, %v503
      %v505 = vadd.s32 %v504, 536870912
      %v506 = vshrl.u32 %v505, 30
      %v507 = vshll.u32 %v506, 30
      %v508 = vsub.s32 %v504, %v507
      %vm509 = vcmp.lt.s32.totalorder %v508, 0
      %v510 = vsub.s32 0, %v508
      %v511 = vsel %vm509, %v510, %v508
      %v512 = vclz %v511
      %v513 = vsub.s32 %v512, 2
      %vm514 = vcmp.gt.s32.totalorder 0, %v513
      %v515 = vsel %vm514, 0, %v513
      %v516 = vsub.s32 32, %v515
      %v517 = vshll.u32 %v508, %v515
      %v518 = vshrl.u32 %v500, %v516
      %v519 = vor.u32 %v517, %v518
      %v520 = vsub.s32 4294967266, %v515
      %v521 = vadd.s32 %v520, 127
      %v522 = vshll.u32 %v521, 23
      %v523 = vor.u32 4788187, %v522
      %v524 = vand.u32 2147483647, %v523
      %v526 = vcvt.s32.f32 %v519
      %v527 = vmul.f32 %v526, %v524
      %v528 = vxor.u32 %v527, 2147483648
      %v529 = vsel %vm446, %v528, %v527
      %v530 = vsub.s32 4, %v506
      %v531 = vsel %vm446, %v530, %v506
      %v532 = vsel %vm445, %v426, %v529
      %v533 = vsel %vm445, 0, %v531
      %v534 = vcosq.f32.pop %v532
      %v535 = vsinq.f32.pop %v532
      %vm536 = vweird.f32 %v426
      %v537 = vadd.s32 %v533, 3
      %v538 = vand.u32 %v537, 3
      %vm539 = vcmp.lt.s32.totalorder %v538, 2
      %vm540 = vcmp.eq.s32.totalorder %v538, 0
      %v541 = vxor.u32 %v535, 2147483648
      %v542 = vsel %vm540, %v534, %v541
      %vm543 = vcmp.eq.s32.totalorder %v538, 2
      %v544 = vxor.u32 %v534, 2147483648
      %v545 = vsel %vm543, %v544, %v535
      %v546 = vsel %vm539, %v542, %v545
      %v547 = vsel %vm536, nan, %v546
      %v548 = vand.u32 2147483647, %v431
      %vm549 = vcmp.le.f32.partialorder %v548, 0.7853982
      %vm550 = vcmp.lt.s32.totalorder %v431, 0
      %v551 = vand.u32 %v431, 2139095040
      %v552 = vshrl.u32 %v551, 23
      %v553 = vsub.s32 %v552, 127
      %v554 = vand.u32 2147483647, %v431
      %v555 = vand.u32 %v554, 8388607
      %v556 = vor.u32 %v555, 8388608
      %v557 = vsub.s32 0, %v556
      %v558 = vadd.s32 %v553, 1
      %vm559 = vcmp.gt.s32.totalorder %v558, 0
      %v560 = vsel %vm559, %v558, 0
      %v561 = vshrl.u32 %v560, 5
      %v562 = vand.u32 %v560, 31
      %v563 = vsub.s32 32, %v562
      %v564 = vshrl.u32 683565275, %v563
      %v565 = vshll.u32 683565275, %v562
      %v566 = vshrl.u32 2475754826, %v563
      %v567 = vor.u32 %v565, %v566
      %v568 = vshll.u32 2475754826, %v562
      %v569 = vshrl.u32 2131351028, %v563
      %v570 = vor.u32 %v568, %v569
      %v571 = vshll.u32 2131351028, %v562
      %v572 = vshrl.u32 2102212464, %v563
      %v573 = vor.u32 %v571, %v572
      %v574 = vshll.u32 2102212464, %v562
      %v575 = vshrl.u32 920167782, %v563
      %v576 = vor.u32 %v574, %v575
      %v577 = vshll.u32 920167782, %v562
      %v578 = vshrl.u32 1326507024, %v563
      %v579 = vor.u32 %v577, %v578
      %vm580 = vcmp.lt.s32.totalorder %v561, 1
      %vm581 = vcmp.lt.s32.totalorder %v561, 2
      %vm582 = vcmp.lt.s32.totalorder %v561, 3
      %vm583 = vcmp.lt.s32.totalorder %v561, 4
      %v584 = vsel %vm580, %v564, %v567
      %v585 = vsel %vm583, %v573, 2102212464
      %v586 = vsel %vm582, %v570, %v585
      %v587 = vsel %vm581, %v584, %v586
      %v588 = vsel %vm580, %v567, %v570
      %v589 = vsel %vm583, %v576, 920167782
      %v590 = vsel %vm582, %v573, %v589
      %v591 = vsel %vm581, %v588, %v590
      %v592 = vsel %vm580, %v570, %v573
      %v593 = vsel %vm583, %v579, 1326507024
      %v594 = vsel %vm582, %v576, %v593
      %v595 = vsel %vm581, %v592, %v594
      %v596 = vshll.u32 %v556, 8
      %v597 = vmul.u32.u64.compose %v596, %v595
      %v598 = vextract.low.u32 %v597
      %v599 = vextract.high.u32 %v597
      %v600 = vmul.u32.u64.compose %v596, %v591
      %v601 = vextract.low.u32 %v600
      %v602 = vextract.high.u32 %v600
      %v603 = vmul.u32 %v596, %v587
      %v604 = vadd.s32 %v599, %v601
      %vm605 = vc.u32 %v599, %v601
      %v606 = vadd.s32 %v602, 1
      %v607 = vsel %vm605, %v606, %v602
      %v608 = vadd.s32 %v603, %v607
      %v609 = vadd.s32 %v608, 536870912
      %v610 = vshrl.u32 %v609, 30
      %v611 = vshll.u32 %v610, 30
      %v612 = vsub.s32 %v608, %v611
      %vm613 = vcmp.lt.s32.totalorder %v612, 0
      %v614 = vsub.s32 0, %v612
      %v615 = vsel %vm613, %v614, %v612
      %v616 = vclz %v615
      %v617 = vsub.s32 %v616, 2
      %vm618 = vcmp.gt.s32.totalorder 0, %v617
      %v619 = vsel %vm618, 0, %v617
      %v620 = vsub.s32 32, %v619
      %v621 = vshll.u32 %v612, %v619
      %v622 = vshrl.u32 %v604, %v620
      %v623 = vor.u32 %v621, %v622
      %v624 = vsub.s32 4294967266, %v619
      %v625 = vadd.s32 %v624, 127
      %v626 = vshll.u32 %v625, 23
      %v627 = vor.u32 4788187, %v626
      %v628 = vand.u32 2147483647, %v627
      %v630 = vcvt.s32.f32 %v623
      %v631 = vmul.f32 %v630, %v628
      %v632 = vxor.u32 %v631, 2147483648
      %v633 = vsel %vm550, %v632, %v631
      %v634 = vsub.s32 4, %v610
      %v635 = vsel %vm550, %v634, %v610
      %v636 = vsel %vm549, %v431, %v633
      %v637 = vsel %vm549, 0, %v635
      %v638 = vcosq.f32.pop %v636
      %v639 = vsinq.f32.pop %v636
      %vm640 = vweird.f32 %v431
      %v641 = vadd.s32 %v637, 3
      %v642 = vand.u32 %v641, 3
      %vm643 = vcmp.lt.s32.totalorder %v642, 2
      %vm644 = vcmp.eq.s32.totalorder %v642, 0
      %v645 = vxor.u32 %v639, 2147483648
      %v646 = vsel %vm644, %v638, %v645
      %vm647 = vcmp.eq.s32.totalorder %v642, 2
      %v648 = vxor.u32 %v638, 2147483648
      %v649 = vsel %vm647, %v648, %v639
      %v650 = vsel %vm643, %v646, %v649
      %v651 = vsel %vm640, nan, %v650
      %v652 = vand.u32 2147483647, %v436
      %vm653 = vcmp.le.f32.partialorder %v652, 0.7853982
      %vm654 = vcmp.lt.s32.totalorder %v436, 0
      %v655 = vand.u32 %v436, 2139095040
      %v656 = vshrl.u32 %v655, 23
      %v657 = vsub.s32 %v656, 127
      %v658 = vand.u32 2147483647, %v436
      %v659 = vand.u32 %v658, 8388607
      %v660 = vor.u32 %v659, 8388608
      %v661 = vsub.s32 0, %v660
      %v662 = vadd.s32 %v657, 1
      %vm663 = vcmp.gt.s32.totalorder %v662, 0
      %v664 = vsel %vm663, %v662, 0
      %v665 = vshrl.u32 %v664, 5
      %v666 = vand.u32 %v664, 31
      %v667 = vsub.s32 32, %v666
      %v668 = vshrl.u32 683565275, %v667
      %v669 = vshll.u32 683565275, %v666
      %v670 = vshrl.u32 2475754826, %v667
      %v671 = vor.u32 %v669, %v670
      %v672 = vshll.u32 2475754826, %v666
      %v673 = vshrl.u32 2131351028, %v667
      %v674 = vor.u32 %v672, %v673
      %v675 = vshll.u32 2131351028, %v666
      %v676 = vshrl.u32 2102212464, %v667
      %v677 = vor.u32 %v675, %v676
      %v678 = vshll.u32 2102212464, %v666
      %v679 = vshrl.u32 920167782, %v667
      %v680 = vor.u32 %v678, %v679
      %v681 = vshll.u32 920167782, %v666
      %v682 = vshrl.u32 1326507024, %v667
      %v683 = vor.u32 %v681, %v682
      %vm684 = vcmp.lt.s32.totalorder %v665, 1
      %vm685 = vcmp.lt.s32.totalorder %v665, 2
      %vm686 = vcmp.lt.s32.totalorder %v665, 3
      %vm687 = vcmp.lt.s32.totalorder %v665, 4
      %v688 = vsel %vm684, %v668, %v671
      %v689 = vsel %vm687, %v677, 2102212464
      %v690 = vsel %vm686, %v674, %v689
      %v691 = vsel %vm685, %v688, %v690
      %v692 = vsel %vm684, %v671, %v674
      %v693 = vsel %vm687, %v680, 920167782
      %v694 = vsel %vm686, %v677, %v693
      %v695 = vsel %vm685, %v692, %v694
      %v696 = vsel %vm684, %v674, %v677
      %v697 = vsel %vm687, %v683, 1326507024
      %v698 = vsel %vm686, %v680, %v697
      %v699 = vsel %vm685, %v696, %v698
      %v700 = vshll.u32 %v660, 8
      %v701 = vmul.u32.u64.compose %v700, %v699
      %v702 = vextract.low.u32 %v701
      %v703 = vextract.high.u32 %v701
      %v704 = vmul.u32.u64.compose %v700, %v695
      %v705 = vextract.low.u32 %v704
      %v706 = vextract.high.u32 %v704
      %v707 = vmul.u32 %v700, %v691
      %v708 = vadd.s32 %v703, %v705
      %vm709 = vc.u32 %v703, %v705
      %v710 = vadd.s32 %v706, 1
      %v711 = vsel %vm709, %v710, %v706
      %v712 = vadd.s32 %v707, %v711
      %v713 = vadd.s32 %v712, 536870912
      %v714 = vshrl.u32 %v713, 30
      %v715 = vshll.u32 %v714, 30
      %v716 = vsub.s32 %v712, %v715
      %vm717 = vcmp.lt.s32.totalorder %v716, 0
      %v718 = vsub.s32 0, %v716
      %v719 = vsel %vm717, %v718, %v716
      %v720 = vclz %v719
      %v721 = vsub.s32 %v720, 2
      %vm722 = vcmp.gt.s32.totalorder 0, %v721
      %v723 = vsel %vm722, 0, %v721
      %v724 = vsub.s32 32, %v723
      %v725 = vshll.u32 %v716, %v723
      %v726 = vshrl.u32 %v708, %v724
      %v727 = vor.u32 %v725, %v726
      %v728 = vsub.s32 4294967266, %v723
      %v729 = vadd.s32 %v728, 127
      %v730 = vshll.u32 %v729, 23
      %v731 = vor.u32 4788187, %v730
      %v732 = vand.u32 2147483647, %v731
      %v734 = vcvt.s32.f32 %v727
      %v735 = vmul.f32 %v734, %v732
      %v736 = vxor.u32 %v735, 2147483648
      %v737 = vsel %vm654, %v736, %v735
      %v738 = vsub.s32 4, %v714
      %v739 = vsel %vm654, %v738, %v714
      %v740 = vsel %vm653, %v436, %v737
      %v741 = vsel %vm653, 0, %v739
      %v742 = vcosq.f32.pop %v740
      %v743 = vsinq.f32.pop %v740
      %vm744 = vweird.f32 %v436
      %v745 = vadd.s32 %v741, 3
      %v746 = vand.u32 %v745, 3
      %vm747 = vcmp.lt.s32.totalorder %v746, 2
      %vm748 = vcmp.eq.s32.totalorder %v746, 0
      %v749 = vxor.u32 %v743, 2147483648
      %v750 = vsel %vm748, %v742, %v749
      %vm751 = vcmp.eq.s32.totalorder %v746, 2
      %v752 = vxor.u32 %v742, 2147483648
      %v753 = vsel %vm751, %v752, %v743
      %v754 = vsel %vm747, %v750, %v753
      %v755 = vsel %vm744, nan, %v754
      %v756 = vand.u32 2147483647, %v441
      %vm757 = vcmp.le.f32.partialorder %v756, 0.7853982
      %vm758 = vcmp.lt.s32.totalorder %v441, 0
      %v759 = vand.u32 %v441, 2139095040
      %v760 = vshrl.u32 %v759, 23
      %v761 = vsub.s32 %v760, 127
      %v762 = vand.u32 2147483647, %v441
      %v763 = vand.u32 %v762, 8388607
      %v764 = vor.u32 %v763, 8388608
      %v765 = vsub.s32 0, %v764
      %v766 = vadd.s32 %v761, 1
      %vm767 = vcmp.gt.s32.totalorder %v766, 0
      %v768 = vsel %vm767, %v766, 0
      %v769 = vshrl.u32 %v768, 5
      %v770 = vand.u32 %v768, 31
      %v771 = vsub.s32 32, %v770
      %v772 = vshrl.u32 683565275, %v771
      %v773 = vshll.u32 683565275, %v770
      %v774 = vshrl.u32 2475754826, %v771
      %v775 = vor.u32 %v773, %v774
      %v776 = vshll.u32 2475754826, %v770
      %v777 = vshrl.u32 2131351028, %v771
      %v778 = vor.u32 %v776, %v777
      %v779 = vshll.u32 2131351028, %v770
      %v780 = vshrl.u32 2102212464, %v771
      %v781 = vor.u32 %v779, %v780
      %v782 = vshll.u32 2102212464, %v770
      %v783 = vshrl.u32 920167782, %v771
      %v784 = vor.u32 %v782, %v783
      %v785 = vshll.u32 920167782, %v770
      %v786 = vshrl.u32 1326507024, %v771
      %v787 = vor.u32 %v785, %v786
      %vm788 = vcmp.lt.s32.totalorder %v769, 1
      %vm789 = vcmp.lt.s32.totalorder %v769, 2
      %vm790 = vcmp.lt.s32.totalorder %v769, 3
      %vm791 = vcmp.lt.s32.totalorder %v769, 4
      %v792 = vsel %vm788, %v772, %v775
      %v793 = vsel %vm791, %v781, 2102212464
      %v794 = vsel %vm790, %v778, %v793
      %v795 = vsel %vm789, %v792, %v794
      %v796 = vsel %vm788, %v775, %v778
      %v797 = vsel %vm791, %v784, 920167782
      %v798 = vsel %vm790, %v781, %v797
      %v799 = vsel %vm789, %v796, %v798
      %v800 = vsel %vm788, %v778, %v781
      %v801 = vsel %vm791, %v787, 1326507024
      %v802 = vsel %vm790, %v784, %v801
      %v803 = vsel %vm789, %v800, %v802
      %v804 = vshll.u32 %v764, 8
      %v805 = vmul.u32.u64.compose %v804, %v803
      %v806 = vextract.low.u32 %v805
      %v807 = vextract.high.u32 %v805
      %v808 = vmul.u32.u64.compose %v804, %v799
      %v809 = vextract.low.u32 %v808
      %v810 = vextract.high.u32 %v808
      %v811 = vmul.u32 %v804, %v795
      %v812 = vadd.s32 %v807, %v809
      %vm813 = vc.u32 %v807, %v809
      %v814 = vadd.s32 %v810, 1
      %v815 = vsel %vm813, %v814, %v810
      %v816 = vadd.s32 %v811, %v815
      %v817 = vadd.s32 %v816, 536870912
      %v818 = vshrl.u32 %v817, 30
      %v819 = vshll.u32 %v818, 30
      %v820 = vsub.s32 %v816, %v819
      %vm821 = vcmp.lt.s32.totalorder %v820, 0
      %v822 = vsub.s32 0, %v820
      %v823 = vsel %vm821, %v822, %v820
      %v824 = vclz %v823
      %v825 = vsub.s32 %v824, 2
      %vm826 = vcmp.gt.s32.totalorder 0, %v825
      %v827 = vsel %vm826, 0, %v825
      %v828 = vsub.s32 32, %v827
      %v829 = vshll.u32 %v820, %v827
      %v830 = vshrl.u32 %v812, %v828
      %v831 = vor.u32 %v829, %v830
      %v832 = vsub.s32 4294967266, %v827
      %v833 = vadd.s32 %v832, 127
      %v834 = vshll.u32 %v833, 23
      %v835 = vor.u32 4788187, %v834
      %v836 = vand.u32 2147483647, %v835
      %v838 = vcvt.s32.f32 %v831
      %v839 = vmul.f32 %v838, %v836
      %v840 = vxor.u32 %v839, 2147483648
      %v841 = vsel %vm758, %v840, %v839
      %v842 = vsub.s32 4, %v818
      %v843 = vsel %vm758, %v842, %v818
      %v844 = vsel %vm757, %v441, %v841
      %v845 = vsel %vm757, 0, %v843
      %v846 = vcosq.f32.pop %v844
      %v847 = vsinq.f32.pop %v844
      %vm848 = vweird.f32 %v441
      %v849 = vadd.s32 %v845, 3
      %v850 = vand.u32 %v849, 3
      %vm851 = vcmp.lt.s32.totalorder %v850, 2
      %vm852 = vcmp.eq.s32.totalorder %v850, 0
      %v853 = vxor.u32 %v847, 2147483648
      %v854 = vsel %vm852, %v846, %v853
      %vm855 = vcmp.eq.s32.totalorder %v850, 2
      %v856 = vxor.u32 %v846, 2147483648
      %v857 = vsel %vm855, %v856, %v847
      %v858 = vsel %vm851, %v854, %v857
      %v859 = vsel %vm848, nan, %v858
      %v860 = vld [vmem:[%s2] sm:$0xff]
      %v861 = vld [vmem:[%s2 + $0x8] sm:$0xff]
      %v862 = vld [vmem:[%s2 + $0x10] sm:$0xff]
      %v863 = vld [vmem:[%s2 + $0x18] sm:$0xff]
      %v864 = vld [vmem:[%s3] sm:$0xff]
      %v865 = vld [vmem:[%s3 + $0x8] sm:$0xff]
      %v866 = vld [vmem:[%s3 + $0x10] sm:$0xff]
      %v867 = vld [vmem:[%s3 + $0x18] sm:$0xff]
      %869 = vset.pattern.permute.xlu0 0
      %870 = vperm.xlu0 %869, %v864
      %v871 = vpop.permute.xlu0 %870
      %874 = vset.pattern.permute.xlu0 0
      %875 = vperm.xlu0 %874, %v865
      %v876 = vpop.permute.xlu0 %875
      %879 = vset.pattern.permute.xlu0 0
      %880 = vperm.xlu0 %879, %v866
      %v881 = vpop.permute.xlu0 %880
      %884 = vset.pattern.permute.xlu0 0
      %885 = vperm.xlu0 %884, %v867
      %v886 = vpop.permute.xlu0 %885
      %vm888 = vcmask 261120
      %v890 = vsel %vm888, %v860, 0
      %v893 = vsel %vm888, %v861, 0
      %v896 = vsel %vm888, %v862, 0
      %v899 = vsel %vm888, %v863, 0
      %901 = vmatprep.subr.mxu0 0.0
      %902 = vmatpush1.msra.mxu0 %v547
      %903 = vmatprep.subr.mxu0 0.0
      %904 = vmatpush1.msra.mxu0 %v651
      %905 = vmatprep.subr.mxu0 0.0
      %906 = vmatpush1.msra.mxu0 %v755
      %907 = vmatprep.subr.mxu0 0.0
      %908 = vmatpush1.msra.mxu0 %v859
      %909 = vmatprep.subr.mxu0 0.0
      %910 = vmatpush1.msra.mxu0 0.0
      %911 = vmatprep.subr.mxu0 0.0
      %912 = vmatpush1.msra.mxu0 0.0
      %913 = vmatprep.subr.mxu0 0.0
      %914 = vmatpush1.msra.mxu0 0.0
      %915 = vmatprep.subr.mxu0 0.0
      %916 = vmatpush1.msra.mxu0 0.0
      %917 = vmatprep.subr.mxu0 0.0
      %918 = vmatpush1.msra.mxu0 0.0
      %919 = vmatprep.subr.mxu0 0.0
      %920 = vmatpush1.msra.mxu0 0.0
      %921 = vmatprep.subr.mxu0 0.0
      %922 = vmatpush1.msra.mxu0 0.0
      %923 = vmatprep.subr.mxu0 0.0
      %924 = vmatpush1.msra.mxu0 0.0
      %925 = vmatprep.subr.mxu0 0.0
      %926 = vmatpush1.msra.mxu0 0.0
      %927 = vmatprep.subr.mxu0 0.0
      %928 = vmatpush1.msra.mxu0 0.0
      %929 = vmatprep.subr.mxu0 0.0
      %930 = vmatpush1.msra.mxu0 0.0
      %931 = vmatprep.subr.mxu0 0.0
      %932 = vmatpush1.msra.mxu0 0.0
      %933 = vmatprep.subr.mxu0 0.0
      %934 = vmatpush1.msra.mxu0 0.0
      %935 = vmatprep.subr.mxu0 0.0
      %936 = vmatpush1.msra.mxu0 0.0
      %937 = vmatprep.subr.mxu0 0.0
      %938 = vmatpush1.msra.mxu0 0.0
      %939 = vmatprep.subr.mxu0 0.0
      %940 = vmatpush1.msra.mxu0 0.0
      %941 = vmatprep.subr.mxu0 0.0
      %942 = vmatpush1.msra.mxu0 0.0
      %943 = vmatprep.subr.mxu0 0.0
      %944 = vmatpush1.msra.mxu0 0.0
      %945 = vmatprep.subr.mxu0 0.0
      %946 = vmatpush1.msra.mxu0 0.0
      %947 = vmatprep.subr.mxu0 0.0
      %948 = vmatpush1.msra.mxu0 0.0
      %949 = vmatprep.subr.mxu0 0.0
      %950 = vmatpush1.msra.mxu0 0.0
      %951 = vmatprep.subr.mxu0 0.0
      %952 = vmatpush1.msra.mxu0 0.0
      %953 = vmatprep.subr.mxu0 0.0
      %954 = vmatpush1.msra.mxu0 0.0
      %955 = vmatprep.subr.mxu0 0.0
      %956 = vmatpush1.msra.mxu0 0.0
      %957 = vmatprep.subr.mxu0 0.0
      %958 = vmatpush1.msra.mxu0 0.0
      %959 = vmatprep.subr.mxu0 0.0
      %960 = vmatpush1.msra.mxu0 0.0
      %961 = vmatprep.subr.mxu0 0.0
      %962 = vmatpush1.msra.mxu0 0.0
      %963 = vmatprep.subr.mxu0 0.0
      %964 = vmatpush1.msra.mxu0 0.0
      %965 = vmatprep.mubr.f32.mxu0 0.0
      %966 = vmatmul.mubr.f32.gmra.mrb[0].mxu0 %v890
      %v967 = vpop.f32.mrb[0].mxu0
      %v968 = vadd.f32 %v871, %v967
      %v969 = vpop.f32.mrb[0].mxu0
      %970 = vmatprep.mubr.f32.mxu0 0.0
      %971 = vmatmul.mubr.f32.gmra.mrb[0].mxu0 %v893
      %v972 = vpop.f32.mrb[0].mxu0
      %v973 = vadd.f32 %v876, %v972
      %v974 = vpop.f32.mrb[0].mxu0
      %975 = vmatprep.mubr.f32.mxu0 0.0
      %976 = vmatmul.mubr.f32.gmra.mrb[0].mxu0 %v896
      %v977 = vpop.f32.mrb[0].mxu0
      %v978 = vadd.f32 %v881, %v977
      %v979 = vpop.f32.mrb[0].mxu0
      %980 = vmatprep.mubr.f32.mxu0 0.0
      %981 = vmatmul.mubr.f32.gmra.mrb[0].mxu0 %v899
      %v982 = vpop.f32.mrb[0].mxu0
      %v983 = vadd.f32 %v886, %v982
      %v984 = vpop.f32.mrb[0].mxu0
      %985 = vdwg.mxu0
      %v986 = vand.u32 2147483647, %v968
      %vm987 = vcmp.le.f32.partialorder %v986, 0.7853982
      %vm988 = vcmp.lt.s32.totalorder %v968, 0
      %v989 = vand.u32 %v968, 2139095040
      %v990 = vshrl.u32 %v989, 23
      %v991 = vsub.s32 %v990, 127
      %v992 = vand.u32 2147483647, %v968
      %v993 = vand.u32 %v992, 8388607
      %v994 = vor.u32 %v993, 8388608
      %v995 = vsub.s32 0, %v994
      %v996 = vadd.s32 %v991, 1
      %vm997 = vcmp.gt.s32.totalorder %v996, 0
      %v998 = vsel %vm997, %v996, 0
      %v999 = vshrl.u32 %v998, 5
      %v1000 = vand.u32 %v998, 31
      %v1001 = vsub.s32 32, %v1000
      %v1002 = vshrl.u32 683565275, %v1001
      %v1003 = vshll.u32 683565275, %v1000
      %v1004 = vshrl.u32 2475754826, %v1001
      %v1005 = vor.u32 %v1003, %v1004
      %v1006 = vshll.u32 2475754826, %v1000
      %v1007 = vshrl.u32 2131351028, %v1001
      %v1008 = vor.u32 %v1006, %v1007
      %v1009 = vshll.u32 2131351028, %v1000
      %v1010 = vshrl.u32 2102212464, %v1001
      %v1011 = vor.u32 %v1009, %v1010
      %v1012 = vshll.u32 2102212464, %v1000
      %v1013 = vshrl.u32 920167782, %v1001
      %v1014 = vor.u32 %v1012, %v1013
      %v1015 = vshll.u32 920167782, %v1000
      %v1016 = vshrl.u32 1326507024, %v1001
      %v1017 = vor.u32 %v1015, %v1016
      %vm1018 = vcmp.lt.s32.totalorder %v999, 1
      %vm1019 = vcmp.lt.s32.totalorder %v999, 2
      %vm1020 = vcmp.lt.s32.totalorder %v999, 3
      %vm1021 = vcmp.lt.s32.totalorder %v999, 4
      %v1022 = vsel %vm1018, %v1002, %v1005
      %v1023 = vsel %vm1021, %v1011, 2102212464
      %v1024 = vsel %vm1020, %v1008, %v1023
      %v1025 = vsel %vm1019, %v1022, %v1024
      %v1026 = vsel %vm1018, %v1005, %v1008
      %v1027 = vsel %vm1021, %v1014, 920167782
      %v1028 = vsel %vm1020, %v1011, %v1027
      %v1029 = vsel %vm1019, %v1026, %v1028
      %v1030 = vsel %vm1018, %v1008, %v1011
      %v1031 = vsel %vm1021, %v1017, 1326507024
      %v1032 = vsel %vm1020, %v1014, %v1031
      %v1033 = vsel %vm1019, %v1030, %v1032
      %v1034 = vshll.u32 %v994, 8
      %v1035 = vmul.u32.u64.compose %v1034, %v1033
      %v1036 = vextract.low.u32 %v1035
      %v1037 = vextract.high.u32 %v1035
      %v1038 = vmul.u32.u64.compose %v1034, %v1029
      %v1039 = vextract.low.u32 %v1038
      %v1040 = vextract.high.u32 %v1038
      %v1041 = vmul.u32 %v1034, %v1025
      %v1042 = vadd.s32 %v1037, %v1039
      %vm1043 = vc.u32 %v1037, %v1039
      %v1044 = vadd.s32 %v1040, 1
      %v1045 = vsel %vm1043, %v1044, %v1040
      %v1046 = vadd.s32 %v1041, %v1045
      %v1047 = vadd.s32 %v1046, 536870912
      %v1048 = vshrl.u32 %v1047, 30
      %v1049 = vshll.u32 %v1048, 30
      %v1050 = vsub.s32 %v1046, %v1049
      %vm1051 = vcmp.lt.s32.totalorder %v1050, 0
      %v1052 = vsub.s32 0, %v1050
      %v1053 = vsel %vm1051, %v1052, %v1050
      %v1054 = vclz %v1053
      %v1055 = vsub.s32 %v1054, 2
      %vm1056 = vcmp.gt.s32.totalorder 0, %v1055
      %v1057 = vsel %vm1056, 0, %v1055
      %v1058 = vsub.s32 32, %v1057
      %v1059 = vshll.u32 %v1050, %v1057
      %v1060 = vshrl.u32 %v1042, %v1058
      %v1061 = vor.u32 %v1059, %v1060
      %v1062 = vsub.s32 4294967266, %v1057
      %v1063 = vadd.s32 %v1062, 127
      %v1064 = vshll.u32 %v1063, 23
      %v1065 = vor.u32 4788187, %v1064
      %v1066 = vand.u32 2147483647, %v1065
      %v1068 = vcvt.s32.f32 %v1061
      %v1069 = vmul.f32 %v1068, %v1066
      %v1070 = vxor.u32 %v1069, 2147483648
      %v1071 = vsel %vm988, %v1070, %v1069
      %v1072 = vsub.s32 4, %v1048
      %v1073 = vsel %vm988, %v1072, %v1048
      %v1074 = vsel %vm987, %v968, %v1071
      %v1075 = vsel %vm987, 0, %v1073
      %v1076 = vcosq.f32.pop %v1074
      %v1077 = vsinq.f32.pop %v1074
      %vm1078 = vweird.f32 %v968
      %v1079 = vadd.s32 %v1075, 3
      %v1080 = vand.u32 %v1079, 3
      %vm1081 = vcmp.lt.s32.totalorder %v1080, 2
      %vm1082 = vcmp.eq.s32.totalorder %v1080, 0
      %v1083 = vxor.u32 %v1077, 2147483648
      %v1084 = vsel %vm1082, %v1076, %v1083
      %vm1085 = vcmp.eq.s32.totalorder %v1080, 2
      %v1086 = vxor.u32 %v1076, 2147483648
      %v1087 = vsel %vm1085, %v1086, %v1077
      %v1088 = vsel %vm1081, %v1084, %v1087
      %v1089 = vsel %vm1078, nan, %v1088
      %v1090 = vand.u32 2147483647, %v973
      %vm1091 = vcmp.le.f32.partialorder %v1090, 0.7853982
      %vm1092 = vcmp.lt.s32.totalorder %v973, 0
      %v1093 = vand.u32 %v973, 2139095040
      %v1094 = vshrl.u32 %v1093, 23
      %v1095 = vsub.s32 %v1094, 127
      %v1096 = vand.u32 2147483647, %v973
      %v1097 = vand.u32 %v1096, 8388607
      %v1098 = vor.u32 %v1097, 8388608
      %v1099 = vsub.s32 0, %v1098
      %v1100 = vadd.s32 %v1095, 1
      %vm1101 = vcmp.gt.s32.totalorder %v1100, 0
      %v1102 = vsel %vm1101, %v1100, 0
      %v1103 = vshrl.u32 %v1102, 5
      %v1104 = vand.u32 %v1102, 31
      %v1105 = vsub.s32 32, %v1104
      %v1106 = vshrl.u32 683565275, %v1105
      %v1107 = vshll.u32 683565275, %v1104
      %v1108 = vshrl.u32 2475754826, %v1105
      %v1109 = vor.u32 %v1107, %v1108
      %v1110 = vshll.u32 2475754826, %v1104
      %v1111 = vshrl.u32 2131351028, %v1105
      %v1112 = vor.u32 %v1110, %v1111
      %v1113 = vshll.u32 2131351028, %v1104
      %v1114 = vshrl.u32 2102212464, %v1105
      %v1115 = vor.u32 %v1113, %v1114
      %v1116 = vshll.u32 2102212464, %v1104
      %v1117 = vshrl.u32 920167782, %v1105
      %v1118 = vor.u32 %v1116, %v1117
      %v1119 = vshll.u32 920167782, %v1104
      %v1120 = vshrl.u32 1326507024, %v1105
      %v1121 = vor.u32 %v1119, %v1120
      %vm1122 = vcmp.lt.s32.totalorder %v1103, 1
      %vm1123 = vcmp.lt.s32.totalorder %v1103, 2
      %vm1124 = vcmp.lt.s32.totalorder %v1103, 3
      %vm1125 = vcmp.lt.s32.totalorder %v1103, 4
      %v1126 = vsel %vm1122, %v1106, %v1109
      %v1127 = vsel %vm1125, %v1115, 2102212464
      %v1128 = vsel %vm1124, %v1112, %v1127
      %v1129 = vsel %vm1123, %v1126, %v1128
      %v1130 = vsel %vm1122, %v1109, %v1112
      %v1131 = vsel %vm1125, %v1118, 920167782
      %v1132 = vsel %vm1124, %v1115, %v1131
      %v1133 = vsel %vm1123, %v1130, %v1132
      %v1134 = vsel %vm1122, %v1112, %v1115
      %v1135 = vsel %vm1125, %v1121, 1326507024
      %v1136 = vsel %vm1124, %v1118, %v1135
      %v1137 = vsel %vm1123, %v1134, %v1136
      %v1138 = vshll.u32 %v1098, 8
      %v1139 = vmul.u32.u64.compose %v1138, %v1137
      %v1140 = vextract.low.u32 %v1139
      %v1141 = vextract.high.u32 %v1139
      %v1142 = vmul.u32.u64.compose %v1138, %v1133
      %v1143 = vextract.low.u32 %v1142
      %v1144 = vextract.high.u32 %v1142
      %v1145 = vmul.u32 %v1138, %v1129
      %v1146 = vadd.s32 %v1141, %v1143
      %vm1147 = vc.u32 %v1141, %v1143
      %v1148 = vadd.s32 %v1144, 1
      %v1149 = vsel %vm1147, %v1148, %v1144
      %v1150 = vadd.s32 %v1145, %v1149
      %v1151 = vadd.s32 %v1150, 536870912
      %v1152 = vshrl.u32 %v1151, 30
      %v1153 = vshll.u32 %v1152, 30
      %v1154 = vsub.s32 %v1150, %v1153
      %vm1155 = vcmp.lt.s32.totalorder %v1154, 0
      %v1156 = vsub.s32 0, %v1154
      %v1157 = vsel %vm1155, %v1156, %v1154
      %v1158 = vclz %v1157
      %v1159 = vsub.s32 %v1158, 2
      %vm1160 = vcmp.gt.s32.totalorder 0, %v1159
      %v1161 = vsel %vm1160, 0, %v1159
      %v1162 = vsub.s32 32, %v1161
      %v1163 = vshll.u32 %v1154, %v1161
      %v1164 = vshrl.u32 %v1146, %v1162
      %v1165 = vor.u32 %v1163, %v1164
      %v1166 = vsub.s32 4294967266, %v1161
      %v1167 = vadd.s32 %v1166, 127
      %v1168 = vshll.u32 %v1167, 23
      %v1169 = vor.u32 4788187, %v1168
      %v1170 = vand.u32 2147483647, %v1169
      %v1172 = vcvt.s32.f32 %v1165
      %v1173 = vmul.f32 %v1172, %v1170
      %v1174 = vxor.u32 %v1173, 2147483648
      %v1175 = vsel %vm1092, %v1174, %v1173
      %v1176 = vsub.s32 4, %v1152
      %v1177 = vsel %vm1092, %v1176, %v1152
      %v1178 = vsel %vm1091, %v973, %v1175
      %v1179 = vsel %vm1091, 0, %v1177
      %v1180 = vcosq.f32.pop %v1178
      %v1181 = vsinq.f32.pop %v1178
      %vm1182 = vweird.f32 %v973
      %v1183 = vadd.s32 %v1179, 3
      %v1184 = vand.u32 %v1183, 3
      %vm1185 = vcmp.lt.s32.totalorder %v1184, 2
      %vm1186 = vcmp.eq.s32.totalorder %v1184, 0
      %v1187 = vxor.u32 %v1181, 2147483648
      %v1188 = vsel %vm1186, %v1180, %v1187
      %vm1189 = vcmp.eq.s32.totalorder %v1184, 2
      %v1190 = vxor.u32 %v1180, 2147483648
      %v1191 = vsel %vm1189, %v1190, %v1181
      %v1192 = vsel %vm1185, %v1188, %v1191
      %v1193 = vsel %vm1182, nan, %v1192
      %v1194 = vand.u32 2147483647, %v978
      %vm1195 = vcmp.le.f32.partialorder %v1194, 0.7853982
      %vm1196 = vcmp.lt.s32.totalorder %v978, 0
      %v1197 = vand.u32 %v978, 2139095040
      %v1198 = vshrl.u32 %v1197, 23
      %v1199 = vsub.s32 %v1198, 127
      %v1200 = vand.u32 2147483647, %v978
      %v1201 = vand.u32 %v1200, 8388607
      %v1202 = vor.u32 %v1201, 8388608
      %v1203 = vsub.s32 0, %v1202
      %v1204 = vadd.s32 %v1199, 1
      %vm1205 = vcmp.gt.s32.totalorder %v1204, 0
      %v1206 = vsel %vm1205, %v1204, 0
      %v1207 = vshrl.u32 %v1206, 5
      %v1208 = vand.u32 %v1206, 31
      %v1209 = vsub.s32 32, %v1208
      %v1210 = vshrl.u32 683565275, %v1209
      %v1211 = vshll.u32 683565275, %v1208
      %v1212 = vshrl.u32 2475754826, %v1209
      %v1213 = vor.u32 %v1211, %v1212
      %v1214 = vshll.u32 2475754826, %v1208
      %v1215 = vshrl.u32 2131351028, %v1209
      %v1216 = vor.u32 %v1214, %v1215
      %v1217 = vshll.u32 2131351028, %v1208
      %v1218 = vshrl.u32 2102212464, %v1209
      %v1219 = vor.u32 %v1217, %v1218
      %v1220 = vshll.u32 2102212464, %v1208
      %v1221 = vshrl.u32 920167782, %v1209
      %v1222 = vor.u32 %v1220, %v1221
      %v1223 = vshll.u32 920167782, %v1208
      %v1224 = vshrl.u32 1326507024, %v1209
      %v1225 = vor.u32 %v1223, %v1224
      %vm1226 = vcmp.lt.s32.totalorder %v1207, 1
      %vm1227 = vcmp.lt.s32.totalorder %v1207, 2
      %vm1228 = vcmp.lt.s32.totalorder %v1207, 3
      %vm1229 = vcmp.lt.s32.totalorder %v1207, 4
      %v1230 = vsel %vm1226, %v1210, %v1213
      %v1231 = vsel %vm1229, %v1219, 2102212464
      %v1232 = vsel %vm1228, %v1216, %v1231
      %v1233 = vsel %vm1227, %v1230, %v1232
      %v1234 = vsel %vm1226, %v1213, %v1216
      %v1235 = vsel %vm1229, %v1222, 920167782
      %v1236 = vsel %vm1228, %v1219, %v1235
      %v1237 = vsel %vm1227, %v1234, %v1236
      %v1238 = vsel %vm1226, %v1216, %v1219
      %v1239 = vsel %vm1229, %v1225, 1326507024
      %v1240 = vsel %vm1228, %v1222, %v1239
      %v1241 = vsel %vm1227, %v1238, %v1240
      %v1242 = vshll.u32 %v1202, 8
      %v1243 = vmul.u32.u64.compose %v1242, %v1241
      %v1244 = vextract.low.u32 %v1243
      %v1245 = vextract.high.u32 %v1243
      %v1246 = vmul.u32.u64.compose %v1242, %v1237
      %v1247 = vextract.low.u32 %v1246
      %v1248 = vextract.high.u32 %v1246
      %v1249 = vmul.u32 %v1242, %v1233
      %v1250 = vadd.s32 %v1245, %v1247
      %vm1251 = vc.u32 %v1245, %v1247
      %v1252 = vadd.s32 %v1248, 1
      %v1253 = vsel %vm1251, %v1252, %v1248
      %v1254 = vadd.s32 %v1249, %v1253
      %v1255 = vadd.s32 %v1254, 536870912
      %v1256 = vshrl.u32 %v1255, 30
      %v1257 = vshll.u32 %v1256, 30
      %v1258 = vsub.s32 %v1254, %v1257
      %vm1259 = vcmp.lt.s32.totalorder %v1258, 0
      %v1260 = vsub.s32 0, %v1258
      %v1261 = vsel %vm1259, %v1260, %v1258
      %v1262 = vclz %v1261
      %v1263 = vsub.s32 %v1262, 2
      %vm1264 = vcmp.gt.s32.totalorder 0, %v1263
      %v1265 = vsel %vm1264, 0, %v1263
      %v1266 = vsub.s32 32, %v1265
      %v1267 = vshll.u32 %v1258, %v1265
      %v1268 = vshrl.u32 %v1250, %v1266
      %v1269 = vor.u32 %v1267, %v1268
      %v1270 = vsub.s32 4294967266, %v1265
      %v1271 = vadd.s32 %v1270, 127
      %v1272 = vshll.u32 %v1271, 23
      %v1273 = vor.u32 4788187, %v1272
      %v1274 = vand.u32 2147483647, %v1273
      %v1276 = vcvt.s32.f32 %v1269
      %v1277 = vmul.f32 %v1276, %v1274
      %v1278 = vxor.u32 %v1277, 2147483648
      %v1279 = vsel %vm1196, %v1278, %v1277
      %v1280 = vsub.s32 4, %v1256
      %v1281 = vsel %vm1196, %v1280, %v1256
      %v1282 = vsel %vm1195, %v978, %v1279
      %v1283 = vsel %vm1195, 0, %v1281
      %v1284 = vcosq.f32.pop %v1282
      %v1285 = vsinq.f32.pop %v1282
      %vm1286 = vweird.f32 %v978
      %v1287 = vadd.s32 %v1283, 3
      %v1288 = vand.u32 %v1287, 3
      %vm1289 = vcmp.lt.s32.totalorder %v1288, 2
      %vm1290 = vcmp.eq.s32.totalorder %v1288, 0
      %v1291 = vxor.u32 %v1285, 2147483648
      %v1292 = vsel %vm1290, %v1284, %v1291
      %vm1293 = vcmp.eq.s32.totalorder %v1288, 2
      %v1294 = vxor.u32 %v1284, 2147483648
      %v1295 = vsel %vm1293, %v1294, %v1285
      %v1296 = vsel %vm1289, %v1292, %v1295
      %v1297 = vsel %vm1286, nan, %v1296
      %v1298 = vand.u32 2147483647, %v983
      %vm1299 = vcmp.le.f32.partialorder %v1298, 0.7853982
      %vm1300 = vcmp.lt.s32.totalorder %v983, 0
      %v1301 = vand.u32 %v983, 2139095040
      %v1302 = vshrl.u32 %v1301, 23
      %v1303 = vsub.s32 %v1302, 127
      %v1304 = vand.u32 2147483647, %v983
      %v1305 = vand.u32 %v1304, 8388607
      %v1306 = vor.u32 %v1305, 8388608
      %v1307 = vsub.s32 0, %v1306
      %v1308 = vadd.s32 %v1303, 1
      %vm1309 = vcmp.gt.s32.totalorder %v1308, 0
      %v1310 = vsel %vm1309, %v1308, 0
      %v1311 = vshrl.u32 %v1310, 5
      %v1312 = vand.u32 %v1310, 31
      %v1313 = vsub.s32 32, %v1312
      %v1314 = vshrl.u32 683565275, %v1313
      %v1315 = vshll.u32 683565275, %v1312
      %v1316 = vshrl.u32 2475754826, %v1313
      %v1317 = vor.u32 %v1315, %v1316
      %v1318 = vshll.u32 2475754826, %v1312
      %v1319 = vshrl.u32 2131351028, %v1313
      %v1320 = vor.u32 %v1318, %v1319
      %v1321 = vshll.u32 2131351028, %v1312
      %v1322 = vshrl.u32 2102212464, %v1313
      %v1323 = vor.u32 %v1321, %v1322
      %v1324 = vshll.u32 2102212464, %v1312
      %v1325 = vshrl.u32 920167782, %v1313
      %v1326 = vor.u32 %v1324, %v1325
      %v1327 = vshll.u32 920167782, %v1312
      %v1328 = vshrl.u32 1326507024, %v1313
      %v1329 = vor.u32 %v1327, %v1328
      %vm1330 = vcmp.lt.s32.totalorder %v1311, 1
      %vm1331 = vcmp.lt.s32.totalorder %v1311, 2
      %vm1332 = vcmp.lt.s32.totalorder %v1311, 3
      %vm1333 = vcmp.lt.s32.totalorder %v1311, 4
      %v1334 = vsel %vm1330, %v1314, %v1317
      %v1335 = vsel %vm1333, %v1323, 2102212464
      %v1336 = vsel %vm1332, %v1320, %v1335
      %v1337 = vsel %vm1331, %v1334, %v1336
      %v1338 = vsel %vm1330, %v1317, %v1320
      %v1339 = vsel %vm1333, %v1326, 920167782
      %v1340 = vsel %vm1332, %v1323, %v1339
      %v1341 = vsel %vm1331, %v1338, %v1340
      %v1342 = vsel %vm1330, %v1320, %v1323
      %v1343 = vsel %vm1333, %v1329, 1326507024
      %v1344 = vsel %vm1332, %v1326, %v1343
      %v1345 = vsel %vm1331, %v1342, %v1344
      %v1346 = vshll.u32 %v1306, 8
      %v1347 = vmul.u32.u64.compose %v1346, %v1345
      %v1348 = vextract.low.u32 %v1347
      %v1349 = vextract.high.u32 %v1347
      %v1350 = vmul.u32.u64.compose %v1346, %v1341
      %v1351 = vextract.low.u32 %v1350
      %v1352 = vextract.high.u32 %v1350
      %v1353 = vmul.u32 %v1346, %v1337
      %v1354 = vadd.s32 %v1349, %v1351
      %vm1355 = vc.u32 %v1349, %v1351
      %v1356 = vadd.s32 %v1352, 1
      %v1357 = vsel %vm1355, %v1356, %v1352
      %v1358 = vadd.s32 %v1353, %v1357
      %v1359 = vadd.s32 %v1358, 536870912
      %v1360 = vshrl.u32 %v1359, 30
      %v1361 = vshll.u32 %v1360, 30
      %v1362 = vsub.s32 %v1358, %v1361
      %vm1363 = vcmp.lt.s32.totalorder %v1362, 0
      %v1364 = vsub.s32 0, %v1362
      %v1365 = vsel %vm1363, %v1364, %v1362
      %v1366 = vclz %v1365
      %v1367 = vsub.s32 %v1366, 2
      %vm1368 = vcmp.gt.s32.totalorder 0, %v1367
      %v1369 = vsel %vm1368, 0, %v1367
      %v1370 = vsub.s32 32, %v1369
      %v1371 = vshll.u32 %v1362, %v1369
      %v1372 = vshrl.u32 %v1354, %v1370
      %v1373 = vor.u32 %v1371, %v1372
      %v1374 = vsub.s32 4294967266, %v1369
      %v1375 = vadd.s32 %v1374, 127
      %v1376 = vshll.u32 %v1375, 23
      %v1377 = vor.u32 4788187, %v1376
      %v1378 = vand.u32 2147483647, %v1377
      %v1380 = vcvt.s32.f32 %v1373
      %v1381 = vmul.f32 %v1380, %v1378
      %v1382 = vxor.u32 %v1381, 2147483648
      %v1383 = vsel %vm1300, %v1382, %v1381
      %v1384 = vsub.s32 4, %v1360
      %v1385 = vsel %vm1300, %v1384, %v1360
      %v1386 = vsel %vm1299, %v983, %v1383
      %v1387 = vsel %vm1299, 0, %v1385
      %v1388 = vcosq.f32.pop %v1386
      %v1389 = vsinq.f32.pop %v1386
      %vm1390 = vweird.f32 %v983
      %v1391 = vadd.s32 %v1387, 3
      %v1392 = vand.u32 %v1391, 3
      %vm1393 = vcmp.lt.s32.totalorder %v1392, 2
      %vm1394 = vcmp.eq.s32.totalorder %v1392, 0
      %v1395 = vxor.u32 %v1389, 2147483648
      %v1396 = vsel %vm1394, %v1388, %v1395
      %vm1397 = vcmp.eq.s32.totalorder %v1392, 2
      %v1398 = vxor.u32 %v1388, 2147483648
      %v1399 = vsel %vm1397, %v1398, %v1389
      %v1400 = vsel %vm1393, %v1396, %v1399
      %v1401 = vsel %vm1390, nan, %v1400
      %v1402 = vld [vmem:[%s324] sm:$0x7]
      %v1403 = vld [vmem:[%s328] sm:$0x7]
      %1405 = vset.pattern.permute.xlu0 0
      %1406 = vperm.xlu0 %1405, %v1403
      %v1407 = vpop.permute.xlu0 %1406
      %v1410 = vsel %vm888, %v1402, 0
      %1412 = vmatprep.subr.mxu0 0.0
      %1413 = vmatpush1.msra.mxu0 %v1089
      %1414 = vmatprep.subr.mxu0 0.0
      %1415 = vmatpush1.msra.mxu0 %v1193
      %1416 = vmatprep.subr.mxu0 0.0
      %1417 = vmatpush1.msra.mxu0 %v1297
      %1418 = vmatprep.subr.mxu0 0.0
      %1419 = vmatpush1.msra.mxu0 %v1401
      %1420 = vmatprep.subr.mxu0 0.0
      %1421 = vmatpush1.msra.mxu0 0.0
      %1422 = vmatprep.subr.mxu0 0.0
      %1423 = vmatpush1.msra.mxu0 0.0
      %1424 = vmatprep.subr.mxu0 0.0
      %1425 = vmatpush1.msra.mxu0 0.0
      %1426 = vmatprep.subr.mxu0 0.0
      %1427 = vmatpush1.msra.mxu0 0.0
      %1428 = vmatprep.subr.mxu0 0.0
      %1429 = vmatpush1.msra.mxu0 0.0
      %1430 = vmatprep.subr.mxu0 0.0
      %1431 = vmatpush1.msra.mxu0 0.0
      %1432 = vmatprep.subr.mxu0 0.0
      %1433 = vmatpush1.msra.mxu0 0.0
      %1434 = vmatprep.subr.mxu0 0.0
      %1435 = vmatpush1.msra.mxu0 0.0
      %1436 = vmatprep.subr.mxu0 0.0
      %1437 = vmatpush1.msra.mxu0 0.0
      %1438 = vmatprep.subr.mxu0 0.0
      %1439 = vmatpush1.msra.mxu0 0.0
      %1440 = vmatprep.subr.mxu0 0.0
      %1441 = vmatpush1.msra.mxu0 0.0
      %1442 = vmatprep.subr.mxu0 0.0
      %1443 = vmatpush1.msra.mxu0 0.0
      %1444 = vmatprep.subr.mxu0 0.0
      %1445 = vmatpush1.msra.mxu0 0.0
      %1446 = vmatprep.subr.mxu0 0.0
      %1447 = vmatpush1.msra.mxu0 0.0
      %1448 = vmatprep.subr.mxu0 0.0
      %1449 = vmatpush1.msra.mxu0 0.0
      %1450 = vmatprep.subr.mxu0 0.0
      %1451 = vmatpush1.msra.mxu0 0.0
      %1452 = vmatprep.subr.mxu0 0.0
      %1453 = vmatpush1.msra.mxu0 0.0
      %1454 = vmatprep.subr.mxu0 0.0
      %1455 = vmatpush1.msra.mxu0 0.0
      %1456 = vmatprep.subr.mxu0 0.0
      %1457 = vmatpush1.msra.mxu0 0.0
      %1458 = vmatprep.subr.mxu0 0.0
      %1459 = vmatpush1.msra.mxu0 0.0
      %1460 = vmatprep.subr.mxu0 0.0
      %1461 = vmatpush1.msra.mxu0 0.0
      %1462 = vmatprep.subr.mxu0 0.0
      %1463 = vmatpush1.msra.mxu0 0.0
      %1464 = vmatprep.subr.mxu0 0.0
      %1465 = vmatpush1.msra.mxu0 0.0
      %1466 = vmatprep.subr.mxu0 0.0
      %1467 = vmatpush1.msra.mxu0 0.0
      %1468 = vmatprep.subr.mxu0 0.0
      %1469 = vmatpush1.msra.mxu0 0.0
      %1470 = vmatprep.subr.mxu0 0.0
      %1471 = vmatpush1.msra.mxu0 0.0
      %1472 = vmatprep.subr.mxu0 0.0
      %1473 = vmatpush1.msra.mxu0 0.0
      %1474 = vmatprep.subr.mxu0 0.0
      %1475 = vmatpush1.msra.mxu0 0.0
      %1476 = vmatprep.mubr.f32.mxu0 0.0
      %1477 = vmatmul.mubr.f32.gmra.mrb[0].mxu0 %v1410
      %v1478 = vpop.f32.mrb[0].mxu0
      %v1479 = vadd.f32 %v1407, %v1478
      %v1480 = vpop.f32.mrb[0].mxu0
      %1481 = vdwg.mxu0
      %1482 = vst [vmem:[%s336] sm:$0x7] %v1479
      %p1483 = scmp.lt.s32.totalorder %s21, 1
      %s1484 = scalar_select %p1483, %s21, 1
      %p1485 = scmp.lt.s32.totalorder %s22, 1
      %s1486 = scalar_select %p1485, %s22, 1
      %s1487 = smul.addr %s1484, 2
      %s1488 = sadd.s32 %s1486, %s1487
      %s1489 = smul.addr %s1488, 4
      %s1490 = scalar_lea.vmem %s6, %s1489
      // Predicated region
      $region45: #{inr_forward.1} parent=43 // pred_check
        %p1491 = pneg %p197
      $region46: #{inr_forward.1} parent=43 // pred_check_branch
        %1493 = sbr.rel (%p1491) target = $region48
      $region47: #{inr_forward.1} parent=43 // pred_region
        _
      $region48: #{inr_forward.1} parent=43 // pred_fallthru
        _
    $region44: #{inr_forward.1} parent=5 // pred_fallthru
      _
    %p1494 = scmp.le.s32.totalorder 2, %s12
    // Predicated region
    $region49: #{inr_forward.1} parent=5 // pred_check
      %p1495 = pneg %p1494
    $region50: #{inr_forward.1} parent=5 // pred_check_branch
      %1497 = sbr.rel (%p1495) target = $region52
    $region51: #{inr_forward.1} parent=5 // pred_region
      %s1498 = ssub.s32 %s12, 2
      // Predicated region
      $region53: #{inr_forward.1} parent=51 // pred_check
        %p1499 = pneg %p203
      $region54: #{inr_forward.1} parent=51 // pred_check_branch
        %1501 = sbr.rel (%p1499) target = $region56
      $region55: #{inr_forward.1} parent=51 // pred_region
        %p1502 = scmp.lt.s32.totalorder %s23, 1
        %s1503 = scalar_select %p1502, %s23, 1
        %p1504 = scmp.lt.s32.totalorder %s24, 1
        %s1505 = scalar_select %p1504, %s24, 1
        %s1506 = smul.addr %s1503, 2
        %s1507 = sadd.s32 %s1505, %s1506
        %s1508 = smul.addr %s1507, 4
        %s1509 = scalar_lea.vmem %s6, %s1508
      $region56: #{inr_forward.1} parent=51 // pred_fallthru
        _
    $region52: #{inr_forward.1} parent=5 // pred_fallthru
      _
  $region6: #{inr_forward.1} parent=0 // loop_footer
    %s16 = sadd.s32 1, %s12
  $region7: #{inr_forward.1} parent=0 // loop_footer_branch
    %11 = sbr.rel target = $region3
  $region8: #{inr_forward.1} parent=0 // loop_exit
    _

</llo_original>
